<compile_context>
chip_gen: v7x
topology: tpu7x:2x2x1
jax: 0.10.0
libtpu: 0.0.40
codegen_flags: <defaults>
</compile_context>

<pallas_src>
import functools

import jax
import jax.numpy as jnp
from jax.experimental import pallas as pl
from jax.experimental.pallas import tpu as pltpu


def _round_up(a, b):
    return ((a + b - 1) // b) * b


# ----------------------------------------------------------------------------
# Kernel
# ----------------------------------------------------------------------------

def _structure_ape_kernel(x_ref, idx_ref, tbl_ref, o_ref, *, group_width,
                          group_cols):
    """One grid step handles a (TM, DOUT) lane-dense tile of packed rows.

    x_ref:   (TM, DOUT)  x dtype   (P original rows folded per packed row)
    idx_ref: (TM, NIDX)  int32     per-group lane targets (pre-offset)
    tbl_ref: (K, DOUT)   float32   fused block-structured embedding table
    o_ref:   (TM, DOUT)
    group_cols[g] = number of index columns whose one-hot lives in lane group g.
    """
    tm = x_ref.shape[0]
    # One lane-iota reused by every group: indices are pre-offset into their
    # group, so every compare targets lanes [0, group_width) only.
    iota = jax.lax.broadcasted_iota(jnp.int32, (tm, group_width), 1)
    idx = idx_ref[...]                      # (TM, NIDX) int32
    acc = x_ref[...].astype(jnp.float32)    # (TM, DOUT)

    col = 0
    for g, ncols in enumerate(group_cols):
        # Multi-hot restricted to this group's 128 lanes.  All columns of a
        # group hit disjoint lane ranges, so OR == sum of one-hots.
        hot = idx[:, col:col + 1] == iota
        for j in range(col + 1, col + ncols):
            hot = jnp.logical_or(hot, idx[:, j:j + 1] == iota)
        col += ncols
        # One MXU pass gathers + sums every embedding of this group for all
        # lane segments (full 128 output lanes -> no masked stores).
        acc = acc + jnp.dot(
            hot.astype(jnp.float32),
            tbl_ref[g * group_width:(g + 1) * group_width, :],
            preferred_element_type=jnp.float32,
            precision=jax.lax.Precision.HIGHEST)

    o_ref[...] = acc.astype(o_ref.dtype)


# ----------------------------------------------------------------------------
# Factory / wrapper
# ----------------------------------------------------------------------------

_IDX_NAMES = ("chord_ids", "tempo_bucket", "melody", "annotation_1")
_TBL_NAMES = ("chord_id_embedding", "tempo_emb", "melody_emb",
              "annotations_emb")


def make_structure_ape(params, d_model, tile_rows=2048):
    """Builds the fused table once and returns a jitted forward(x, structure_dict)."""
    tables = [jnp.asarray(params[n], jnp.float32) for n in _TBL_NAMES]
    n_tab = len(tables)
    vocab = [int(t.shape[0]) for t in tables]
    for t in tables:
        assert int(t.shape[1]) == d_model
    offs, acc = [], 0
    for v in vocab:
        offs.append(acc)
        acc += v
    v_total = acc
    D = d_model

    # Lane-packing factor: fold P consecutive rows into one 128-lane row.
    if D % 128 == 0:
        P = 1
    elif 128 % D == 0:
        P = 128 // D
    else:
        P = 1  # TODO(synk): D neither divides nor is divided by 128 -> lane-masked stores
    d_out = P * D
    n_idx = P * n_tab

    # Segment / group layout of the fused one-hot contraction dimension.
    if v_total <= 64 and P >= 2:
        spg, seg_w = 2, 64          # two 64-lane segments share one 128-lane group
    else:
        spg, seg_w = 1, _round_up(max(v_total, 8), 128)
    group_w = spg * seg_w
    n_groups = -(-P // spg)
    K = n_groups * group_w
    group_cols = tuple(min(spg, P - g * spg) * n_tab for g in range(n_groups))

    # Fused block-structured table (built once, hoisted out of forward):
    # segment p's rows hold the concatenated vocab in output cols [p*D,(p+1)*D).
    cat = jnp.concatenate(tables, axis=0)                     # (V_total, D)
    big_tbl = jnp.zeros((K, d_out), jnp.float32)
    for p in range(P):
        r0 = (p // spg) * group_w + (p % spg) * seg_w
        big_tbl = big_tbl.at[r0:r0 + v_total, p * D:(p + 1) * D].set(cat)
    big_tbl = jax.device_put(big_tbl)

    # Per-(position, table) lane offset inside the position's group.
    lane_off = jnp.asarray(
        [[(p % spg) * seg_w + offs[t] for t in range(n_tab)] for p in range(P)],
        dtype=jnp.int32)                                      # (P, n_tab)

    kernel = functools.partial(_structure_ape_kernel,
                               group_width=group_w, group_cols=group_cols)

    @jax.jit
    def forward(x, structure_dict):
        B, S, d = x.shape
        assert d == D
        N = B * S

        idx = jnp.stack(
            [structure_dict[n].reshape(N).astype(jnp.int32) for n in _IDX_NAMES],
            axis=-1)                                          # (N, n_tab)
        x_flat = x.reshape(N, D)

        # Pad only to a multiple of P (<= P-1 rows, usually zero); the grid is
        # cdiv so there is never a tile-multiple pad (no extra full copy of x).
        m = -(-N // P)
        if m * P != N:
            pad = m * P - N
            x_flat = jnp.pad(x_flat, ((0, pad), (0, 0)))
            idx = jnp.pad(idx, ((0, pad), (0, 0)))
        x_packed = x_flat.reshape(m, d_out)
        idx_packed = (idx.reshape(m, P, n_tab) + lane_off[None, :, :]
                      ).reshape(m, n_idx)

        # Tile sizing: large row tiles (~<= 4 MiB / buffer); keep >= 2 grid
        # steps when there is enough work so both v7x TensorCores get used.
        bytes_per_row = d_out * x.dtype.itemsize
        cap = max(8, ((4 * 1024 * 1024) // bytes_per_row) // 8 * 8)
        if m < 16:
            tm = m                                  # single full-extent block
        else:
            tm = max(8, (min(tile_rows, cap) // 8) * 8)
            tm = min(tm, _round_up(-(-m // 2), 8))  # at least 2 grid steps
        grid_m = -(-m // tm)

        vmem_limit = int(min(110 * 2**20,
                             max(32 * 2**20, 14 * tm * max(d_out, 128) * 4)))

        out_packed = pl.pallas_call(
            kernel,
            out_shape=jax.ShapeDtypeStruct((m, d_out), x.dtype),
            grid_spec=pltpu.PrefetchScalarGridSpec(
                num_scalar_prefetch=0,
                grid=(grid_m,),
                in_specs=[
                    pl.BlockSpec((tm, d_out), lambda i: (i, 0)),   # x rows (lane-dense)
                    pl.BlockSpec((tm, n_idx), lambda i: (i, 0)),   # fused indices
                    pl.BlockSpec((K, d_out), lambda i: (0, 0)),    # table (resident)
                ],
                out_specs=pl.BlockSpec((tm, d_out), lambda i: (i, 0)),
            ),
            compiler_params=pltpu.CompilerParams(
                dimension_semantics=("parallel",),
                vmem_limit_bytes=vmem_limit),
        )(x_packed, idx_packed, big_tbl)

        return out_packed.reshape(m * P, D)[:N].reshape(B, S, D)

    return forward


# ----------------------------------------------------------------------------
# Reference (pure JAX) for validation
# ----------------------------------------------------------------------------

def structure_ape_reference(x, structure_dict, params):
    def lookup(tbl, idx):
        return jnp.squeeze(tbl[idx], axis=2)

    pe = (lookup(params["chord_id_embedding"], structure_dict["chord_ids"])
          + lookup(params["tempo_emb"], structure_dict["tempo_bucket"])
          + lookup(params["melody_emb"], structure_dict["melody"])
          + lookup(params["annotations_emb"], structure_dict["annotation_1"]))
    return x + pe


# ----------------------------------------------------------------------------
# Main
# ----------------------------------------------------------------------------

if __name__ == "__main__":
    key = jax.random.PRNGKey(0)
    D = 32
    structure_dims = {"chord_ids": 24, "tempo_bucket": 8, "melody": 16,
                      "annotation": 12}
    keys = jax.random.split(key, 8)

    # nn.Embedding default init: N(0, 1)
    params = {
        "chord_id_embedding": jax.random.normal(
            keys[0], (structure_dims["chord_ids"], D), jnp.float32),
        "tempo_emb": jax.random.normal(
            keys[1], (structure_dims["tempo_bucket"], D), jnp.float32),
        "melody_emb": jax.random.normal(
            keys[2], (structure_dims["melody"], D), jnp.float32),
        "annotations_emb": jax.random.normal(
            keys[3], (structure_dims["annotation"], D), jnp.float32),
    }

    forward = make_structure_ape(params, D)

    def make_inputs(kx, ks, B, S):
        x = jax.random.normal(kx, (B, S, D), jnp.float32)
        kk = jax.random.split(ks, 4)
        sd = {
            "chord_ids": jax.random.randint(
                kk[0], (B, S, 1), 0, structure_dims["chord_ids"], jnp.int32),
            "tempo_bucket": jax.random.randint(
                kk[1], (B, S, 1), 0, structure_dims["tempo_bucket"], jnp.int32),
            "melody": jax.random.randint(
                kk[2], (B, S, 1), 0, structure_dims["melody"], jnp.int32),
            "annotation_1": jax.random.randint(
                kk[3], (B, S, 1), 0, structure_dims["annotation"], jnp.int32),
        }
        return x, sd

    # Small shape (single full-extent block path).
    x, sd = make_inputs(keys[4], keys[5], 2, 8)
    out = jax.block_until_ready(forward(x, sd))
    ref = structure_ape_reference(x, sd, params)
    assert out.shape == x.shape
    assert jnp.allclose(out, ref, atol=1e-5, rtol=1e-5), "mismatch (small)"

    # Larger shape exercising the tiled / ragged-last-block / megacore path.
    x2, sd2 = make_inputs(keys[6], keys[7], 2, 600)
    out2 = jax.block_until_ready(forward(x2, sd2))
    ref2 = structure_ape_reference(x2, sd2, params)
    assert jnp.allclose(out2, ref2, atol=1e-5, rtol=1e-5), "mismatch (tiled)"

    print("KERNEL_OK")
</pallas_src>

<mosaic_0001>
module attributes {stable_mosaic.version = 11 : i64} {
  func.func @_structure_ape_kernel(%arg0: i32, %arg1: memref<4x128xf32, #tpu.memory_space<vmem>>, %arg2: memref<4x16xi32, #tpu.memory_space<vmem>>, %arg3: memref<256x128xf32, #tpu.memory_space<vmem>>, %arg4: memref<4x128xf32, #tpu.memory_space<vmem>>) attributes {dimension_semantics = [#tpu.dimension_semantics<parallel>], iteration_bounds = array<i64: 1>, scalar_prefetch = 0 : i64, scratch_operands = 0 : i64, tpu.core_type = #tpu.core_type<tc>, window_params = [{transform_indices = @transform_0, window_bounds = array<i64: 4, 128>}, {transform_indices = @transform_1, window_bounds = array<i64: 4, 16>}, {pipeline_mode = #tpu.pipeline_mode<synchronous>, transform_indices = @transform_2, window_bounds = array<i64: 256, 128>}, {transform_indices = @transform_3, window_bounds = array<i64: 4, 128>}]} {
    %0 = tpu.iota {dimensions = array<i32: 1>} : vector<4x128xi32>
    %c0 = arith.constant 0 : index
    %c0_0 = arith.constant 0 : index
    %1 = vector.load %arg2[%c0, %c0_0] : memref<4x16xi32, #tpu.memory_space<vmem>>, vector<4x16xi32>
    %c0_1 = arith.constant 0 : index
    %c0_2 = arith.constant 0 : index
    %2 = vector.load %arg1[%c0_1, %c0_2] : memref<4x128xf32, #tpu.memory_space<vmem>>, vector<4x128xf32>
    %3 = vector.extract_strided_slice %1 {offsets = [0, 0], sizes = [4, 1], strides = [1, 1]} : vector<4x16xi32> to vector<4x1xi32>
    %4 = vector.broadcast %3 : vector<4x1xi32> to vector<4x128xi32>
    %5 = arith.cmpi eq, %4, %0 : vector<4x128xi32>
    %6 = vector.extract_strided_slice %1 {offsets = [0, 1], sizes = [4, 1], strides = [1, 1]} : vector<4x16xi32> to vector<4x1xi32>
    %7 = vector.broadcast %6 : vector<4x1xi32> to vector<4x128xi32>
    %8 = arith.cmpi eq, %7, %0 : vector<4x128xi32>
    %9 = arith.ori %5, %8 : vector<4x128xi1>
    %10 = vector.extract_strided_slice %1 {offsets = [0, 2], sizes = [4, 1], strides = [1, 1]} : vector<4x16xi32> to vector<4x1xi32>
    %11 = vector.broadcast %10 : vector<4x1xi32> to vector<4x128xi32>
    %12 = arith.cmpi eq, %11, %0 : vector<4x128xi32>
    %13 = arith.ori %9, %12 : vector<4x128xi1>
    %14 = vector.extract_strided_slice %1 {offsets = [0, 3], sizes = [4, 1], strides = [1, 1]} : vector<4x16xi32> to vector<4x1xi32>
    %15 = vector.broadcast %14 : vector<4x1xi32> to vector<4x128xi32>
    %16 = arith.cmpi eq, %15, %0 : vector<4x128xi32>
    %17 = arith.ori %13, %16 : vector<4x128xi1>
    %18 = vector.extract_strided_slice %1 {offsets = [0, 4], sizes = [4, 1], strides = [1, 1]} : vector<4x16xi32> to vector<4x1xi32>
    %19 = vector.broadcast %18 : vector<4x1xi32> to vector<4x128xi32>
    %20 = arith.cmpi eq, %19, %0 : vector<4x128xi32>
    %21 = arith.ori %17, %20 : vector<4x128xi1>
    %22 = vector.extract_strided_slice %1 {offsets = [0, 5], sizes = [4, 1], strides = [1, 1]} : vector<4x16xi32> to vector<4x1xi32>
    %23 = vector.broadcast %22 : vector<4x1xi32> to vector<4x128xi32>
    %24 = arith.cmpi eq, %23, %0 : vector<4x128xi32>
    %25 = arith.ori %21, %24 : vector<4x128xi1>
    %26 = vector.extract_strided_slice %1 {offsets = [0, 6], sizes = [4, 1], strides = [1, 1]} : vector<4x16xi32> to vector<4x1xi32>
    %27 = vector.broadcast %26 : vector<4x1xi32> to vector<4x128xi32>
    %28 = arith.cmpi eq, %27, %0 : vector<4x128xi32>
    %29 = arith.ori %25, %28 : vector<4x128xi1>
    %30 = vector.extract_strided_slice %1 {offsets = [0, 7], sizes = [4, 1], strides = [1, 1]} : vector<4x16xi32> to vector<4x1xi32>
    %31 = vector.broadcast %30 : vector<4x1xi32> to vector<4x128xi32>
    %32 = arith.cmpi eq, %31, %0 : vector<4x128xi32>
    %33 = arith.ori %29, %32 : vector<4x128xi1>
    %34 = arith.extui %33 : vector<4x128xi1> to vector<4x128xi32>
    %35 = arith.sitofp %34 : vector<4x128xi32> to vector<4x128xf32>
    %c0_3 = arith.constant 0 : index
    %c0_4 = arith.constant 0 : index
    %36 = vector.load %arg3[%c0_3, %c0_4] : memref<256x128xf32, #tpu.memory_space<vmem>>, vector<128x128xf32>
    %cst = arith.constant dense<0.000000e+00> : vector<4x128xf32>
    %37 = tpu.matmul %35, %36, %cst {dimension_numbers = #tpu.dot_dimension_numbers<[1], [0], [0], [1], [0, 0, 1, 1], [], []>, precision = #tpu.contract_precision<fp32>} : vector<4x128xf32>, vector<128x128xf32>, vector<4x128xf32> -> vector<4x128xf32>
    %38 = arith.addf %2, %37 : vector<4x128xf32>
    %39 = vector.extract_strided_slice %1 {offsets = [0, 8], sizes = [4, 1], strides = [1, 1]} : vector<4x16xi32> to vector<4x1xi32>
    %40 = vector.broadcast %39 : vector<4x1xi32> to vector<4x128xi32>
    %41 = arith.cmpi eq, %40, %0 : vector<4x128xi32>
    %42 = vector.extract_strided_slice %1 {offsets = [0, 9], sizes = [4, 1], strides = [1, 1]} : vector<4x16xi32> to vector<4x1xi32>
    %43 = vector.broadcast %42 : vector<4x1xi32> to vector<4x128xi32>
    %44 = arith.cmpi eq, %43, %0 : vector<4x128xi32>
    %45 = arith.ori %41, %44 : vector<4x128xi1>
    %46 = vector.extract_strided_slice %1 {offsets = [0, 10], sizes = [4, 1], strides = [1, 1]} : vector<4x16xi32> to vector<4x1xi32>
    %47 = vector.broadcast %46 : vector<4x1xi32> to vector<4x128xi32>
    %48 = arith.cmpi eq, %47, %0 : vector<4x128xi32>
    %49 = arith.ori %45, %48 : vector<4x128xi1>
    %50 = vector.extract_strided_slice %1 {offsets = [0, 11], sizes = [4, 1], strides = [1, 1]} : vector<4x16xi32> to vector<4x1xi32>
    %51 = vector.broadcast %50 : vector<4x1xi32> to vector<4x128xi32>
    %52 = arith.cmpi eq, %51, %0 : vector<4x128xi32>
    %53 = arith.ori %49, %52 : vector<4x128xi1>
    %54 = vector.extract_strided_slice %1 {offsets = [0, 12], sizes = [4, 1], strides = [1, 1]} : vector<4x16xi32> to vector<4x1xi32>
    %55 = vector.broadcast %54 : vector<4x1xi32> to vector<4x128xi32>
    %56 = arith.cmpi eq, %55, %0 : vector<4x128xi32>
    %57 = arith.ori %53, %56 : vector<4x128xi1>
    %58 = vector.extract_strided_slice %1 {offsets = [0, 13], sizes = [4, 1], strides = [1, 1]} : vector<4x16xi32> to vector<4x1xi32>
    %59 = vector.broadcast %58 : vector<4x1xi32> to vector<4x128xi32>
    %60 = arith.cmpi eq, %59, %0 : vector<4x128xi32>
    %61 = arith.ori %57, %60 : vector<4x128xi1>
    %62 = vector.extract_strided_slice %1 {offsets = [0, 14], sizes = [4, 1], strides = [1, 1]} : vector<4x16xi32> to vector<4x1xi32>
    %63 = vector.broadcast %62 : vector<4x1xi32> to vector<4x128xi32>
    %64 = arith.cmpi eq, %63, %0 : vector<4x128xi32>
    %65 = arith.ori %61, %64 : vector<4x128xi1>
    %66 = vector.extract_strided_slice %1 {offsets = [0, 15], sizes = [4, 1], strides = [1, 1]} : vector<4x16xi32> to vector<4x1xi32>
    %67 = vector.broadcast %66 : vector<4x1xi32> to vector<4x128xi32>
    %68 = arith.cmpi eq, %67, %0 : vector<4x128xi32>
    %69 = arith.ori %65, %68 : vector<4x128xi1>
    %70 = arith.extui %69 : vector<4x128xi1> to vector<4x128xi32>
    %71 = arith.sitofp %70 : vector<4x128xi32> to vector<4x128xf32>
    %c128 = arith.constant 128 : index
    %c0_5 = arith.constant 0 : index
    %72 = vector.load %arg3[%c128, %c0_5] : memref<256x128xf32, #tpu.memory_space<vmem>>, vector<128x128xf32>
    %cst_6 = arith.constant dense<0.000000e+00> : vector<4x128xf32>
    %73 = tpu.matmul %71, %72, %cst_6 {dimension_numbers = #tpu.dot_dimension_numbers<[1], [0], [0], [1], [0, 0, 1, 1], [], []>, precision = #tpu.contract_precision<fp32>} : vector<4x128xf32>, vector<128x128xf32>, vector<4x128xf32> -> vector<4x128xf32>
    %74 = arith.addf %38, %73 : vector<4x128xf32>
    %c0_7 = arith.constant 0 : index
    %c0_8 = arith.constant 0 : index
    %75 = vector.load %arg4[%c0_7, %c0_8] : memref<4x128xf32, #tpu.memory_space<vmem>>, vector<4x128xf32>
    tpu.vector_store %arg4[%c0_7, %c0_8], %74 {strides = array<i32>} : memref<4x128xf32, #tpu.memory_space<vmem>>, vector<4x128xf32>,
    return
  }
  func.func @transform_0(%arg0: i32) -> (i32, i32) {
    %c0_i32 = arith.constant 0 : i32
    %c0_i32_0 = arith.constant 0 : i32
    return %arg0, %c0_i32 : i32, i32
  }
  func.func @transform_1(%arg0: i32) -> (i32, i32) {
    %c0_i32 = arith.constant 0 : i32
    %c0_i32_0 = arith.constant 0 : i32
    return %arg0, %c0_i32 : i32, i32
  }
  func.func @transform_2(%arg0: i32) -> (i32, i32) {
    %c0_i32 = arith.constant 0 : i32
    %c0_i32_0 = arith.constant 0 : i32
    %c0_i32_1 = arith.constant 0 : i32
    return %c0_i32, %c0_i32_0 : i32, i32
  }
  func.func @transform_3(%arg0: i32) -> (i32, i32) {
    %c0_i32 = arith.constant 0 : i32
    %c0_i32_0 = arith.constant 0 : i32
    return %arg0, %c0_i32 : i32, i32
  }
}

</mosaic_0001>

<llo_original>
// kernel: forward.1
$region0: #{forward.1}
  #allocation0 [shape = 'u32[]', space=smem, size = 0x4, offset = 0x4, fixed_abs, tag = 'smem constant byte address 0x4 - core index']
  #allocation1 [shape = 'u32[144,128]{1,0:T(1,128)}', space=vmem, size = 0x12000, scoped, tag = 'internal scratch']
  %s0 = inlined_call_operand.vmem [shape: f32[4,128], index: 0, kind: input, shape index: {}]
  %s1 = inlined_call_operand.vmem [shape: s32[4,16], index: 1, kind: input, shape index: {}]
  %s2 = inlined_call_operand.hbm [shape: f32[256,128], index: 2, kind: input, shape index: {}]
  %s3 = inlined_call_operand.vmem [shape: f32[4,128], index: 3, kind: output, shape index: {}]
  %s4 = sld [smem:[#allocation0]]
  $region26: #{forward.1} parent=0
    _
  %s6 = ssub.s32 1, %s4
  %s7 = scalar_select 0, %s6, %s4
  $region1: #{forward.1} parent=0
    #allocation2 [shape = 'u8[131072]{0}', space=vmem, size = 0x20000, scoped, tag = 'input window, operand 2, single buffered']
    #allocation3 [shape = 's32[1]{0}', space=sflag, size = 0x4, scoped, tag = 'scoped memory for forward.1']
    %8 = vsyncpa [#allocation3], 0
    // Predicated region
    $region2: #{forward.1} parent=1 // pred_check
      _
    $region3: #{forward.1} parent=1 // pred_check_branch
      %10 = sbr.rel (0) target = $region5
    $region4: #{forward.1} parent=1 // pred_region
      _
    $region5: #{forward.1} parent=1 // pred_fallthru
      _
    // Predicated region
    $region6: #{forward.1} parent=1 // pred_check
      _
    $region7: #{forward.1} parent=1 // pred_check_branch
      %12 = sbr.rel (0) target = $region9
    $region8: #{forward.1} parent=1 // pred_region
      _
    $region9: #{forward.1} parent=1 // pred_fallthru
      _
    // Predicated region
    $region10: #{forward.1} parent=1 // pred_check
      _
    $region11: #{forward.1} parent=1 // pred_check_branch
      %14 = sbr.rel (0) target = $region13
    $region12: #{forward.1} parent=1 // pred_region
      %s16 = ssub.s32 4096, 4096
      %17 = vsyncadd [#allocation3], %s16
      %s18 = sshll.u32 [#allocation2], 4
      %s19 = int_to_ptr.vmem [resolvable:$true] %s18
      %24 = dma.hbm_to_vmem [thread:$0]  %s2, 4096, %s19, [#allocation3], 128, 128, 8
    $region13: #{forward.1} parent=1 // pred_fallthru
      _
    // Predicated region
    $region14: #{forward.1} parent=1 // pred_check
      _
    $region15: #{forward.1} parent=1 // pred_check_branch
      %26 = sbr.rel (0) target = $region17
    $region16: #{forward.1} parent=1 // pred_region
      %27 = dma.done [#allocation3], 4096
    $region17: #{forward.1} parent=1 // pred_fallthru
      _
    %v28 = vlaneseq
    %v29 = vand.u32 %v28, 127
    %v30 = vld [vmem:[%s1] sm:$0xf]
    %v31 = vld [vmem:[%s0] sm:$0xf]
    %32 = vset.pattern.permute.xlu0 0
    %33 = vperm.xlu0 %32, %v30
    %v34 = vpop.permute.xlu0 %33
    %vm35 = vcmp.eq.s32.totalorder %v34, %v29
    %36 = vset.pattern.permute.xlu0 1
    %37 = vperm.xlu0 %36, %v30
    %v38 = vpop.permute.xlu0 %37
    %vm39 = vcmp.eq.s32.totalorder %v38, %v29
    %vm40 = vmor %vm35, %vm39
    %41 = vset.pattern.permute.xlu0 2
    %42 = vperm.xlu0 %41, %v30
    %v43 = vpop.permute.xlu0 %42
    %vm44 = vcmp.eq.s32.totalorder %v43, %v29
    %vm45 = vmor %vm40, %vm44
    %46 = vset.pattern.permute.xlu0 3
    %47 = vperm.xlu0 %46, %v30
    %v48 = vpop.permute.xlu0 %47
    %vm49 = vcmp.eq.s32.totalorder %v48, %v29
    %vm50 = vmor %vm45, %vm49
    %51 = vset.pattern.permute.xlu0 4
    %52 = vperm.xlu0 %51, %v30
    %v53 = vpop.permute.xlu0 %52
    %vm54 = vcmp.eq.s32.totalorder %v53, %v29
    %vm55 = vmor %vm50, %vm54
    %56 = vset.pattern.permute.xlu0 5
    %57 = vperm.xlu0 %56, %v30
    %v58 = vpop.permute.xlu0 %57
    %vm59 = vcmp.eq.s32.totalorder %v58, %v29
    %vm60 = vmor %vm55, %vm59
    %61 = vset.pattern.permute.xlu0 6
    %62 = vperm.xlu0 %61, %v30
    %v63 = vpop.permute.xlu0 %62
    %vm64 = vcmp.eq.s32.totalorder %v63, %v29
    %vm65 = vmor %vm60, %vm64
    %66 = vset.pattern.permute.xlu0 7
    %67 = vperm.xlu0 %66, %v30
    %v68 = vpop.permute.xlu0 %67
    %vm69 = vcmp.eq.s32.totalorder %v68, %v29
    %vm70 = vmor %vm65, %vm69
    %v71 = vsel %vm70, 1, 0
    %v72 = vcvt.s32.f32 %v71
    %v73 = vld [vmem:[#allocation2] sm:$0xff]
    %v74 = vld [vmem:[#allocation2 + $0x8] sm:$0xff]
    %v75 = vld [vmem:[#allocation2 + $0x10] sm:$0xff]
    %v76 = vld [vmem:[#allocation2 + $0x18] sm:$0xff]
    %v77 = vld [vmem:[#allocation2 + $0x20] sm:$0xff]
    %v78 = vld [vmem:[#allocation2 + $0x28] sm:$0xff]
    %v79 = vld [vmem:[#allocation2 + $0x30] sm:$0xff]
    %v80 = vld [vmem:[#allocation2 + $0x38] sm:$0xff]
    %v81 = vld [vmem:[#allocation2 + $0x40] sm:$0xff]
    %v82 = vld [vmem:[#allocation2 + $0x48] sm:$0xff]
    %v83 = vld [vmem:[#allocation2 + $0x50] sm:$0xff]
    %v84 = vld [vmem:[#allocation2 + $0x58] sm:$0xff]
    %v85 = vld [vmem:[#allocation2 + $0x60] sm:$0xff]
    %v86 = vld [vmem:[#allocation2 + $0x68] sm:$0xff]
    %v87 = vld [vmem:[#allocation2 + $0x70] sm:$0xff]
    %v88 = vld [vmem:[#allocation2 + $0x78] sm:$0xff]
    %89 = vmatprep.subr.mxu0 0.0
    %v90 = vand.u32 %v73, 4294901760
    %91 = vmatpush1.msra.mxu0 %v90
    %92 = vmatprep.subr.mxu0 0.0
    %v93 = vand.u32 %v74, 4294901760
    %94 = vmatpush1.msra.mxu0 %v93
    %95 = vmatprep.subr.mxu0 0.0
    %v96 = vand.u32 %v75, 4294901760
    %97 = vmatpush1.msra.mxu0 %v96
    %98 = vmatprep.subr.mxu0 0.0
    %v99 = vand.u32 %v76, 4294901760
    %100 = vmatpush1.msra.mxu0 %v99
    %101 = vmatprep.subr.mxu0 0.0
    %v102 = vand.u32 %v77, 4294901760
    %103 = vmatpush1.msra.mxu0 %v102
    %104 = vmatprep.subr.mxu0 0.0
    %v105 = vand.u32 %v78, 4294901760
    %106 = vmatpush1.msra.mxu0 %v105
    %107 = vmatprep.subr.mxu0 0.0
    %v108 = vand.u32 %v79, 4294901760
    %109 = vmatpush1.msra.mxu0 %v108
    %110 = vmatprep.subr.mxu0 0.0
    %v111 = vand.u32 %v80, 4294901760
    %112 = vmatpush1.msra.mxu0 %v111
    %113 = vmatprep.subr.mxu0 0.0
    %v114 = vand.u32 %v81, 4294901760
    %115 = vmatpush1.msra.mxu0 %v114
    %116 = vmatprep.subr.mxu0 0.0
    %v117 = vand.u32 %v82, 4294901760
    %118 = vmatpush1.msra.mxu0 %v117
    %119 = vmatprep.subr.mxu0 0.0
    %v120 = vand.u32 %v83, 4294901760
    %121 = vmatpush1.msra.mxu0 %v120
    %122 = vmatprep.subr.mxu0 0.0
    %v123 = vand.u32 %v84, 4294901760
    %124 = vmatpush1.msra.mxu0 %v123
    %125 = vmatprep.subr.mxu0 0.0
    %v126 = vand.u32 %v85, 4294901760
    %127 = vmatpush1.msra.mxu0 %v126
    %128 = vmatprep.subr.mxu0 0.0
    %v129 = vand.u32 %v86, 4294901760
    %130 = vmatpush1.msra.mxu0 %v129
    %131 = vmatprep.subr.mxu0 0.0
    %v132 = vand.u32 %v87, 4294901760
    %133 = vmatpush1.msra.mxu0 %v132
    %134 = vmatprep.subr.mxu0 0.0
    %v135 = vand.u32 %v88, 4294901760
    %136 = vmatpush1.msra.mxu0 %v135
    %137 = vmatprep.subr.mxu0 0.0
    %138 = vmatpush1.msra.mxu0 0.0
    %139 = vmatprep.subr.mxu0 0.0
    %140 = vmatpush1.msra.mxu0 0.0
    %141 = vmatprep.subr.mxu0 0.0
    %142 = vmatpush1.msra.mxu0 0.0
    %143 = vmatprep.subr.mxu0 0.0
    %144 = vmatpush1.msra.mxu0 0.0
    %145 = vmatprep.subr.mxu0 0.0
    %146 = vmatpush1.msra.mxu0 0.0
    %147 = vmatprep.subr.mxu0 0.0
    %148 = vmatpush1.msra.mxu0 0.0
    %149 = vmatprep.subr.mxu0 0.0
    %150 = vmatpush1.msra.mxu0 0.0
    %151 = vmatprep.subr.mxu0 0.0
    %152 = vmatpush1.msra.mxu0 0.0
    %153 = vmatprep.subr.mxu0 0.0
    %154 = vmatpush1.msra.mxu0 0.0
    %155 = vmatprep.subr.mxu0 0.0
    %156 = vmatpush1.msra.mxu0 0.0
    %157 = vmatprep.subr.mxu0 0.0
    %158 = vmatpush1.msra.mxu0 0.0
    %159 = vmatprep.subr.mxu0 0.0
    %160 = vmatpush1.msra.mxu0 0.0
    %161 = vmatprep.subr.mxu0 0.0
    %162 = vmatpush1.msra.mxu0 0.0
    %163 = vmatprep.subr.mxu0 0.0
    %164 = vmatpush1.msra.mxu0 0.0
    %165 = vmatprep.subr.mxu0 0.0
    %166 = vmatpush1.msra.mxu0 0.0
    %167 = vmatprep.subr.mxu0 0.0
    %168 = vmatpush1.msra.mxu0 0.0
    %169 = vmatprep.mubr.f32.mxu0 0.0
    %v170 = vand.u32 %v72, 4294901760
    %v171 = vsub.f32 %v72, %v170
    %v172 = vand.u32 %v171, 4294901760
    %v173 = vsub.f32 %v171, %v172
    %v174 = vand.u32 %v173, 4294901760
    %175 = vmatmul.mubr.f32.gmra.mrb[0].mxu0 %v174
    %v176 = vpop.f32.mrb[0].mxu0
    %v177 = vadd.f32 0.0, %v176
    %v178 = vpop.f32.mrb[0].mxu0
    %179 = vdwg.mxu0
    %180 = vmatprep.subr.mxu0 0.0
    %v181 = vand.u32 %v73, 4294901760
    %v182 = vsub.f32 %v73, %v181
    %v183 = vand.u32 %v182, 4294901760
    %v184 = vsub.f32 %v182, %v183
    %v185 = vand.u32 %v184, 4294901760
    %186 = vmatpush1.msra.mxu0 %v185
    %187 = vmatprep.subr.mxu0 0.0
    %v188 = vand.u32 %v74, 4294901760
    %v189 = vsub.f32 %v74, %v188
    %v190 = vand.u32 %v189, 4294901760
    %v191 = vsub.f32 %v189, %v190
    %v192 = vand.u32 %v191, 4294901760
    %193 = vmatpush1.msra.mxu0 %v192
    %194 = vmatprep.subr.mxu0 0.0
    %v195 = vand.u32 %v75, 4294901760
    %v196 = vsub.f32 %v75, %v195
    %v197 = vand.u32 %v196, 4294901760
    %v198 = vsub.f32 %v196, %v197
    %v199 = vand.u32 %v198, 4294901760
    %200 = vmatpush1.msra.mxu0 %v199
    %201 = vmatprep.subr.mxu0 0.0
    %v202 = vand.u32 %v76, 4294901760
    %v203 = vsub.f32 %v76, %v202
    %v204 = vand.u32 %v203, 4294901760
    %v205 = vsub.f32 %v203, %v204
    %v206 = vand.u32 %v205, 4294901760
    %207 = vmatpush1.msra.mxu0 %v206
    %208 = vmatprep.subr.mxu0 0.0
    %v209 = vand.u32 %v77, 4294901760
    %v210 = vsub.f32 %v77, %v209
    %v211 = vand.u32 %v210, 4294901760
    %v212 = vsub.f32 %v210, %v211
    %v213 = vand.u32 %v212, 4294901760
    %214 = vmatpush1.msra.mxu0 %v213
    %215 = vmatprep.subr.mxu0 0.0
    %v216 = vand.u32 %v78, 4294901760
    %v217 = vsub.f32 %v78, %v216
    %v218 = vand.u32 %v217, 4294901760
    %v219 = vsub.f32 %v217, %v218
    %v220 = vand.u32 %v219, 4294901760
    %221 = vmatpush1.msra.mxu0 %v220
    %222 = vmatprep.subr.mxu0 0.0
    %v223 = vand.u32 %v79, 4294901760
    %v224 = vsub.f32 %v79, %v223
    %v225 = vand.u32 %v224, 4294901760
    %v226 = vsub.f32 %v224, %v225
    %v227 = vand.u32 %v226, 4294901760
    %228 = vmatpush1.msra.mxu0 %v227
    %229 = vmatprep.subr.mxu0 0.0
    %v230 = vand.u32 %v80, 4294901760
    %v231 = vsub.f32 %v80, %v230
    %v232 = vand.u32 %v231, 4294901760
    %v233 = vsub.f32 %v231, %v232
    %v234 = vand.u32 %v233, 4294901760
    %235 = vmatpush1.msra.mxu0 %v234
    %236 = vmatprep.subr.mxu0 0.0
    %v237 = vand.u32 %v81, 4294901760
    %v238 = vsub.f32 %v81, %v237
    %v239 = vand.u32 %v238, 4294901760
    %v240 = vsub.f32 %v238, %v239
    %v241 = vand.u32 %v240, 4294901760
    %242 = vmatpush1.msra.mxu0 %v241
    %243 = vmatprep.subr.mxu0 0.0
    %v244 = vand.u32 %v82, 4294901760
    %v245 = vsub.f32 %v82, %v244
    %v246 = vand.u32 %v245, 4294901760
    %v247 = vsub.f32 %v245, %v246
    %v248 = vand.u32 %v247, 4294901760
    %249 = vmatpush1.msra.mxu0 %v248
    %250 = vmatprep.subr.mxu0 0.0
    %v251 = vand.u32 %v83, 4294901760
    %v252 = vsub.f32 %v83, %v251
    %v253 = vand.u32 %v252, 4294901760
    %v254 = vsub.f32 %v252, %v253
    %v255 = vand.u32 %v254, 4294901760
    %256 = vmatpush1.msra.mxu0 %v255
    %257 = vmatprep.subr.mxu0 0.0
    %v258 = vand.u32 %v84, 4294901760
    %v259 = vsub.f32 %v84, %v258
    %v260 = vand.u32 %v259, 4294901760
    %v261 = vsub.f32 %v259, %v260
    %v262 = vand.u32 %v261, 4294901760
    %263 = vmatpush1.msra.mxu0 %v262
    %264 = vmatprep.subr.mxu0 0.0
    %v265 = vand.u32 %v85, 4294901760
    %v266 = vsub.f32 %v85, %v265
    %v267 = vand.u32 %v266, 4294901760
    %v268 = vsub.f32 %v266, %v267
    %v269 = vand.u32 %v268, 4294901760
    %270 = vmatpush1.msra.mxu0 %v269
    %271 = vmatprep.subr.mxu0 0.0
    %v272 = vand.u32 %v86, 4294901760
    %v273 = vsub.f32 %v86, %v272
    %v274 = vand.u32 %v273, 4294901760
    %v275 = vsub.f32 %v273, %v274
    %v276 = vand.u32 %v275, 4294901760
    %277 = vmatpush1.msra.mxu0 %v276
    %278 = vmatprep.subr.mxu0 0.0
    %v279 = vand.u32 %v87, 4294901760
    %v280 = vsub.f32 %v87, %v279
    %v281 = vand.u32 %v280, 4294901760
    %v282 = vsub.f32 %v280, %v281
    %v283 = vand.u32 %v282, 4294901760
    %284 = vmatpush1.msra.mxu0 %v283
    %285 = vmatprep.subr.mxu0 0.0
    %v286 = vand.u32 %v88, 4294901760
    %v287 = vsub.f32 %v88, %v286
    %v288 = vand.u32 %v287, 4294901760
    %v289 = vsub.f32 %v287, %v288
    %v290 = vand.u32 %v289, 4294901760
    %291 = vmatpush1.msra.mxu0 %v290
    %292 = vmatprep.subr.mxu0 0.0
    %293 = vmatpush1.msra.mxu0 0.0
    %294 = vmatprep.subr.mxu0 0.0
    %295 = vmatpush1.msra.mxu0 0.0
    %296 = vmatprep.subr.mxu0 0.0
    %297 = vmatpush1.msra.mxu0 0.0
    %298 = vmatprep.subr.mxu0 0.0
    %299 = vmatpush1.msra.mxu0 0.0
    %300 = vmatprep.subr.mxu0 0.0
    %301 = vmatpush1.msra.mxu0 0.0
    %302 = vmatprep.subr.mxu0 0.0
    %303 = vmatpush1.msra.mxu0 0.0
    %304 = vmatprep.subr.mxu0 0.0
    %305 = vmatpush1.msra.mxu0 0.0
    %306 = vmatprep.subr.mxu0 0.0
    %307 = vmatpush1.msra.mxu0 0.0
    %308 = vmatprep.subr.mxu0 0.0
    %309 = vmatpush1.msra.mxu0 0.0
    %310 = vmatprep.subr.mxu0 0.0
    %311 = vmatpush1.msra.mxu0 0.0
    %312 = vmatprep.subr.mxu0 0.0
    %313 = vmatpush1.msra.mxu0 0.0
    %314 = vmatprep.subr.mxu0 0.0
    %315 = vmatpush1.msra.mxu0 0.0
    %316 = vmatprep.subr.mxu0 0.0
    %317 = vmatpush1.msra.mxu0 0.0
    %318 = vmatprep.subr.mxu0 0.0
    %319 = vmatpush1.msra.mxu0 0.0
    %320 = vmatprep.subr.mxu0 0.0
    %321 = vmatpush1.msra.mxu0 0.0
    %322 = vmatprep.subr.mxu0 0.0
    %323 = vmatpush1.msra.mxu0 0.0
    %324 = vmatprep.mubr.f32.mxu0 0.0
    %v325 = vand.u32 %v72, 4294901760
    %326 = vmatmul.mubr.f32.gmra.mrb[0].mxu0 %v325
    %v327 = vpop.f32.mrb[0].mxu0
    %v328 = vadd.f32 %v177, %v327
    %v329 = vpop.f32.mrb[0].mxu0
    %330 = vdwg.mxu0
    %331 = vmatprep.subr.mxu0 0.0
    %v332 = vand.u32 %v73, 4294901760
    %v333 = vsub.f32 %v73, %v332
    %334 = vmatpush1.msra.mxu0 %v333
    %335 = vmatprep.subr.mxu0 0.0
    %v336 = vand.u32 %v74, 4294901760
    %v337 = vsub.f32 %v74, %v336
    %338 = vmatpush1.msra.mxu0 %v337
    %339 = vmatprep.subr.mxu0 0.0
    %v340 = vand.u32 %v75, 4294901760
    %v341 = vsub.f32 %v75, %v340
    %342 = vmatpush1.msra.mxu0 %v341
    %343 = vmatprep.subr.mxu0 0.0
    %v344 = vand.u32 %v76, 4294901760
    %v345 = vsub.f32 %v76, %v344
    %346 = vmatpush1.msra.mxu0 %v345
    %347 = vmatprep.subr.mxu0 0.0
    %v348 = vand.u32 %v77, 4294901760
    %v349 = vsub.f32 %v77, %v348
    %350 = vmatpush1.msra.mxu0 %v349
    %351 = vmatprep.subr.mxu0 0.0
    %v352 = vand.u32 %v78, 4294901760
    %v353 = vsub.f32 %v78, %v352
    %354 = vmatpush1.msra.mxu0 %v353
    %355 = vmatprep.subr.mxu0 0.0
    %v356 = vand.u32 %v79, 4294901760
    %v357 = vsub.f32 %v79, %v356
    %358 = vmatpush1.msra.mxu0 %v357
    %359 = vmatprep.subr.mxu0 0.0
    %v360 = vand.u32 %v80, 4294901760
    %v361 = vsub.f32 %v80, %v360
    %362 = vmatpush1.msra.mxu0 %v361
    %363 = vmatprep.subr.mxu0 0.0
    %v364 = vand.u32 %v81, 4294901760
    %v365 = vsub.f32 %v81, %v364
    %366 = vmatpush1.msra.mxu0 %v365
    %367 = vmatprep.subr.mxu0 0.0
    %v368 = vand.u32 %v82, 4294901760
    %v369 = vsub.f32 %v82, %v368
    %370 = vmatpush1.msra.mxu0 %v369
    %371 = vmatprep.subr.mxu0 0.0
    %v372 = vand.u32 %v83, 4294901760
    %v373 = vsub.f32 %v83, %v372
    %374 = vmatpush1.msra.mxu0 %v373
    %375 = vmatprep.subr.mxu0 0.0
    %v376 = vand.u32 %v84, 4294901760
    %v377 = vsub.f32 %v84, %v376
    %378 = vmatpush1.msra.mxu0 %v377
    %379 = vmatprep.subr.mxu0 0.0
    %v380 = vand.u32 %v85, 4294901760
    %v381 = vsub.f32 %v85, %v380
    %382 = vmatpush1.msra.mxu0 %v381
    %383 = vmatprep.subr.mxu0 0.0
    %v384 = vand.u32 %v86, 4294901760
    %v385 = vsub.f32 %v86, %v384
    %386 = vmatpush1.msra.mxu0 %v385
    %387 = vmatprep.subr.mxu0 0.0
    %v388 = vand.u32 %v87, 4294901760
    %v389 = vsub.f32 %v87, %v388
    %390 = vmatpush1.msra.mxu0 %v389
    %391 = vmatprep.subr.mxu0 0.0
    %v392 = vand.u32 %v88, 4294901760
    %v393 = vsub.f32 %v88, %v392
    %394 = vmatpush1.msra.mxu0 %v393
    %395 = vmatprep.subr.mxu0 0.0
    %396 = vmatpush1.msra.mxu0 0.0
    %397 = vmatprep.subr.mxu0 0.0
    %398 = vmatpush1.msra.mxu0 0.0
    %399 = vmatprep.subr.mxu0 0.0
    %400 = vmatpush1.msra.mxu0 0.0
    %401 = vmatprep.subr.mxu0 0.0
    %402 = vmatpush1.msra.mxu0 0.0
    %403 = vmatprep.subr.mxu0 0.0
    %404 = vmatpush1.msra.mxu0 0.0
    %405 = vmatprep.subr.mxu0 0.0
    %406 = vmatpush1.msra.mxu0 0.0
    %407 = vmatprep.subr.mxu0 0.0
    %408 = vmatpush1.msra.mxu0 0.0
    %409 = vmatprep.subr.mxu0 0.0
    %410 = vmatpush1.msra.mxu0 0.0
    %411 = vmatprep.subr.mxu0 0.0
    %412 = vmatpush1.msra.mxu0 0.0
    %413 = vmatprep.subr.mxu0 0.0
    %414 = vmatpush1.msra.mxu0 0.0
    %415 = vmatprep.subr.mxu0 0.0
    %416 = vmatpush1.msra.mxu0 0.0
    %417 = vmatprep.subr.mxu0 0.0
    %418 = vmatpush1.msra.mxu0 0.0
    %419 = vmatprep.subr.mxu0 0.0
    %420 = vmatpush1.msra.mxu0 0.0
    %421 = vmatprep.subr.mxu0 0.0
    %422 = vmatpush1.msra.mxu0 0.0
    %423 = vmatprep.subr.mxu0 0.0
    %424 = vmatpush1.msra.mxu0 0.0
    %425 = vmatprep.subr.mxu0 0.0
    %426 = vmatpush1.msra.mxu0 0.0
    %427 = vmatprep.mubr.f32.mxu0 0.0
    %v428 = vand.u32 %v72, 4294901760
    %v429 = vsub.f32 %v72, %v428
    %430 = vmatmul.mubr.f32.gmra.mrb[0].mxu0 %v429
    %v431 = vpop.f32.mrb[0].mxu0
    %v432 = vadd.f32 %v328, %v431
    %v433 = vpop.f32.mrb[0].mxu0
    %434 = vdwg.mxu0
    %435 = vmatprep.subr.mxu0 0.0
    %v436 = vand.u32 %v73, 4294901760
    %437 = vmatpush1.msra.mxu0 %v436
    %438 = vmatprep.subr.mxu0 0.0
    %v439 = vand.u32 %v74, 4294901760
    %440 = vmatpush1.msra.mxu0 %v439
    %441 = vmatprep.subr.mxu0 0.0
    %v442 = vand.u32 %v75, 4294901760
    %443 = vmatpush1.msra.mxu0 %v442
    %444 = vmatprep.subr.mxu0 0.0
    %v445 = vand.u32 %v76, 4294901760
    %446 = vmatpush1.msra.mxu0 %v445
    %447 = vmatprep.subr.mxu0 0.0
    %v448 = vand.u32 %v77, 4294901760
    %449 = vmatpush1.msra.mxu0 %v448
    %450 = vmatprep.subr.mxu0 0.0
    %v451 = vand.u32 %v78, 4294901760
    %452 = vmatpush1.msra.mxu0 %v451
    %453 = vmatprep.subr.mxu0 0.0
    %v454 = vand.u32 %v79, 4294901760
    %455 = vmatpush1.msra.mxu0 %v454
    %456 = vmatprep.subr.mxu0 0.0
    %v457 = vand.u32 %v80, 4294901760
    %458 = vmatpush1.msra.mxu0 %v457
    %459 = vmatprep.subr.mxu0 0.0
    %v460 = vand.u32 %v81, 4294901760
    %461 = vmatpush1.msra.mxu0 %v460
    %462 = vmatprep.subr.mxu0 0.0
    %v463 = vand.u32 %v82, 4294901760
    %464 = vmatpush1.msra.mxu0 %v463
    %465 = vmatprep.subr.mxu0 0.0
    %v466 = vand.u32 %v83, 4294901760
    %467 = vmatpush1.msra.mxu0 %v466
    %468 = vmatprep.subr.mxu0 0.0
    %v469 = vand.u32 %v84, 4294901760
    %470 = vmatpush1.msra.mxu0 %v469
    %471 = vmatprep.subr.mxu0 0.0
    %v472 = vand.u32 %v85, 4294901760
    %473 = vmatpush1.msra.mxu0 %v472
    %474 = vmatprep.subr.mxu0 0.0
    %v475 = vand.u32 %v86, 4294901760
    %476 = vmatpush1.msra.mxu0 %v475
    %477 = vmatprep.subr.mxu0 0.0
    %v478 = vand.u32 %v87, 4294901760
    %479 = vmatpush1.msra.mxu0 %v478
    %480 = vmatprep.subr.mxu0 0.0
    %v481 = vand.u32 %v88, 4294901760
    %482 = vmatpush1.msra.mxu0 %v481
    %483 = vmatprep.subr.mxu0 0.0
    %484 = vmatpush1.msra.mxu0 0.0
    %485 = vmatprep.subr.mxu0 0.0
    %486 = vmatpush1.msra.mxu0 0.0
    %487 = vmatprep.subr.mxu0 0.0
    %488 = vmatpush1.msra.mxu0 0.0
    %489 = vmatprep.subr.mxu0 0.0
    %490 = vmatpush1.msra.mxu0 0.0
    %491 = vmatprep.subr.mxu0 0.0
    %492 = vmatpush1.msra.mxu0 0.0
    %493 = vmatprep.subr.mxu0 0.0
    %494 = vmatpush1.msra.mxu0 0.0
    %495 = vmatprep.subr.mxu0 0.0
    %496 = vmatpush1.msra.mxu0 0.0
    %497 = vmatprep.subr.mxu0 0.0
    %498 = vmatpush1.msra.mxu0 0.0
    %499 = vmatprep.subr.mxu0 0.0
    %500 = vmatpush1.msra.mxu0 0.0
    %501 = vmatprep.subr.mxu0 0.0
    %502 = vmatpush1.msra.mxu0 0.0
    %503 = vmatprep.subr.mxu0 0.0
    %504 = vmatpush1.msra.mxu0 0.0
    %505 = vmatprep.subr.mxu0 0.0
    %506 = vmatpush1.msra.mxu0 0.0
    %507 = vmatprep.subr.mxu0 0.0
    %508 = vmatpush1.msra.mxu0 0.0
    %509 = vmatprep.subr.mxu0 0.0
    %510 = vmatpush1.msra.mxu0 0.0
    %511 = vmatprep.subr.mxu0 0.0
    %512 = vmatpush1.msra.mxu0 0.0
    %513 = vmatprep.subr.mxu0 0.0
    %514 = vmatpush1.msra.mxu0 0.0
    %515 = vmatprep.mubr.f32.mxu0 0.0
    %v516 = vand.u32 %v72, 4294901760
    %v517 = vsub.f32 %v72, %v516
    %v518 = vand.u32 %v517, 4294901760
    %519 = vmatmul.mubr.f32.gmra.mrb[0].mxu0 %v518
    %v520 = vpop.f32.mrb[0].mxu0
    %v521 = vadd.f32 %v432, %v520
    %v522 = vpop.f32.mrb[0].mxu0
    %523 = vdwg.mxu0
    %524 = vmatprep.subr.mxu0 0.0
    %v525 = vand.u32 %v73, 4294901760
    %v526 = vsub.f32 %v73, %v525
    %v527 = vand.u32 %v526, 4294901760
    %528 = vmatpush1.msra.mxu0 %v527
    %529 = vmatprep.subr.mxu0 0.0
    %v530 = vand.u32 %v74, 4294901760
    %v531 = vsub.f32 %v74, %v530
    %v532 = vand.u32 %v531, 4294901760
    %533 = vmatpush1.msra.mxu0 %v532
    %534 = vmatprep.subr.mxu0 0.0
    %v535 = vand.u32 %v75, 4294901760
    %v536 = vsub.f32 %v75, %v535
    %v537 = vand.u32 %v536, 4294901760
    %538 = vmatpush1.msra.mxu0 %v537
    %539 = vmatprep.subr.mxu0 0.0
    %v540 = vand.u32 %v76, 4294901760
    %v541 = vsub.f32 %v76, %v540
    %v542 = vand.u32 %v541, 4294901760
    %543 = vmatpush1.msra.mxu0 %v542
    %544 = vmatprep.subr.mxu0 0.0
    %v545 = vand.u32 %v77, 4294901760
    %v546 = vsub.f32 %v77, %v545
    %v547 = vand.u32 %v546, 4294901760
    %548 = vmatpush1.msra.mxu0 %v547
    %549 = vmatprep.subr.mxu0 0.0
    %v550 = vand.u32 %v78, 4294901760
    %v551 = vsub.f32 %v78, %v550
    %v552 = vand.u32 %v551, 4294901760
    %553 = vmatpush1.msra.mxu0 %v552
    %554 = vmatprep.subr.mxu0 0.0
    %v555 = vand.u32 %v79, 4294901760
    %v556 = vsub.f32 %v79, %v555
    %v557 = vand.u32 %v556, 4294901760
    %558 = vmatpush1.msra.mxu0 %v557
    %559 = vmatprep.subr.mxu0 0.0
    %v560 = vand.u32 %v80, 4294901760
    %v561 = vsub.f32 %v80, %v560
    %v562 = vand.u32 %v561, 4294901760
    %563 = vmatpush1.msra.mxu0 %v562
    %564 = vmatprep.subr.mxu0 0.0
    %v565 = vand.u32 %v81, 4294901760
    %v566 = vsub.f32 %v81, %v565
    %v567 = vand.u32 %v566, 4294901760
    %568 = vmatpush1.msra.mxu0 %v567
    %569 = vmatprep.subr.mxu0 0.0
    %v570 = vand.u32 %v82, 4294901760
    %v571 = vsub.f32 %v82, %v570
    %v572 = vand.u32 %v571, 4294901760
    %573 = vmatpush1.msra.mxu0 %v572
    %574 = vmatprep.subr.mxu0 0.0
    %v575 = vand.u32 %v83, 4294901760
    %v576 = vsub.f32 %v83, %v575
    %v577 = vand.u32 %v576, 4294901760
    %578 = vmatpush1.msra.mxu0 %v577
    %579 = vmatprep.subr.mxu0 0.0
    %v580 = vand.u32 %v84, 4294901760
    %v581 = vsub.f32 %v84, %v580
    %v582 = vand.u32 %v581, 4294901760
    %583 = vmatpush1.msra.mxu0 %v582
    %584 = vmatprep.subr.mxu0 0.0
    %v585 = vand.u32 %v85, 4294901760
    %v586 = vsub.f32 %v85, %v585
    %v587 = vand.u32 %v586, 4294901760
    %588 = vmatpush1.msra.mxu0 %v587
    %589 = vmatprep.subr.mxu0 0.0
    %v590 = vand.u32 %v86, 4294901760
    %v591 = vsub.f32 %v86, %v590
    %v592 = vand.u32 %v591, 4294901760
    %593 = vmatpush1.msra.mxu0 %v592
    %594 = vmatprep.subr.mxu0 0.0
    %v595 = vand.u32 %v87, 4294901760
    %v596 = vsub.f32 %v87, %v595
    %v597 = vand.u32 %v596, 4294901760
    %598 = vmatpush1.msra.mxu0 %v597
    %599 = vmatprep.subr.mxu0 0.0
    %v600 = vand.u32 %v88, 4294901760
    %v601 = vsub.f32 %v88, %v600
    %v602 = vand.u32 %v601, 4294901760
    %603 = vmatpush1.msra.mxu0 %v602
    %604 = vmatprep.subr.mxu0 0.0
    %605 = vmatpush1.msra.mxu0 0.0
    %606 = vmatprep.subr.mxu0 0.0
    %607 = vmatpush1.msra.mxu0 0.0
    %608 = vmatprep.subr.mxu0 0.0
    %609 = vmatpush1.msra.mxu0 0.0
    %610 = vmatprep.subr.mxu0 0.0
    %611 = vmatpush1.msra.mxu0 0.0
    %612 = vmatprep.subr.mxu0 0.0
    %613 = vmatpush1.msra.mxu0 0.0
    %614 = vmatprep.subr.mxu0 0.0
    %615 = vmatpush1.msra.mxu0 0.0
    %616 = vmatprep.subr.mxu0 0.0
    %617 = vmatpush1.msra.mxu0 0.0
    %618 = vmatprep.subr.mxu0 0.0
    %619 = vmatpush1.msra.mxu0 0.0
    %620 = vmatprep.subr.mxu0 0.0
    %621 = vmatpush1.msra.mxu0 0.0
    %622 = vmatprep.subr.mxu0 0.0
    %623 = vmatpush1.msra.mxu0 0.0
    %624 = vmatprep.subr.mxu0 0.0
    %625 = vmatpush1.msra.mxu0 0.0
    %626 = vmatprep.subr.mxu0 0.0
    %627 = vmatpush1.msra.mxu0 0.0
    %628 = vmatprep.subr.mxu0 0.0
    %629 = vmatpush1.msra.mxu0 0.0
    %630 = vmatprep.subr.mxu0 0.0
    %631 = vmatpush1.msra.mxu0 0.0
    %632 = vmatprep.subr.mxu0 0.0
    %633 = vmatpush1.msra.mxu0 0.0
    %634 = vmatprep.subr.mxu0 0.0
    %635 = vmatpush1.msra.mxu0 0.0
    %636 = vmatprep.mubr.f32.mxu0 0.0
    %v637 = vand.u32 %v72, 4294901760
    %638 = vmatmul.mubr.f32.gmra.mrb[0].mxu0 %v637
    %v639 = vpop.f32.mrb[0].mxu0
    %v640 = vadd.f32 %v521, %v639
    %v641 = vpop.f32.mrb[0].mxu0
    %642 = vdwg.mxu0
    %643 = vmatprep.subr.mxu0 0.0
    %v644 = vand.u32 %v73, 4294901760
    %645 = vmatpush1.msra.mxu0 %v644
    %646 = vmatprep.subr.mxu0 0.0
    %v647 = vand.u32 %v74, 4294901760
    %648 = vmatpush1.msra.mxu0 %v647
    %649 = vmatprep.subr.mxu0 0.0
    %v650 = vand.u32 %v75, 4294901760
    %651 = vmatpush1.msra.mxu0 %v650
    %652 = vmatprep.subr.mxu0 0.0
    %v653 = vand.u32 %v76, 4294901760
    %654 = vmatpush1.msra.mxu0 %v653
    %655 = vmatprep.subr.mxu0 0.0
    %v656 = vand.u32 %v77, 4294901760
    %657 = vmatpush1.msra.mxu0 %v656
    %658 = vmatprep.subr.mxu0 0.0
    %v659 = vand.u32 %v78, 4294901760
    %660 = vmatpush1.msra.mxu0 %v659
    %661 = vmatprep.subr.mxu0 0.0
    %v662 = vand.u32 %v79, 4294901760
    %663 = vmatpush1.msra.mxu0 %v662
    %664 = vmatprep.subr.mxu0 0.0
    %v665 = vand.u32 %v80, 4294901760
    %666 = vmatpush1.msra.mxu0 %v665
    %667 = vmatprep.subr.mxu0 0.0
    %v668 = vand.u32 %v81, 4294901760
    %669 = vmatpush1.msra.mxu0 %v668
    %670 = vmatprep.subr.mxu0 0.0
    %v671 = vand.u32 %v82, 4294901760
    %672 = vmatpush1.msra.mxu0 %v671
    %673 = vmatprep.subr.mxu0 0.0
    %v674 = vand.u32 %v83, 4294901760
    %675 = vmatpush1.msra.mxu0 %v674
    %676 = vmatprep.subr.mxu0 0.0
    %v677 = vand.u32 %v84, 4294901760
    %678 = vmatpush1.msra.mxu0 %v677
    %679 = vmatprep.subr.mxu0 0.0
    %v680 = vand.u32 %v85, 4294901760
    %681 = vmatpush1.msra.mxu0 %v680
    %682 = vmatprep.subr.mxu0 0.0
    %v683 = vand.u32 %v86, 4294901760
    %684 = vmatpush1.msra.mxu0 %v683
    %685 = vmatprep.subr.mxu0 0.0
    %v686 = vand.u32 %v87, 4294901760
    %687 = vmatpush1.msra.mxu0 %v686
    %688 = vmatprep.subr.mxu0 0.0
    %v689 = vand.u32 %v88, 4294901760
    %690 = vmatpush1.msra.mxu0 %v689
    %691 = vmatprep.subr.mxu0 0.0
    %692 = vmatpush1.msra.mxu0 0.0
    %693 = vmatprep.subr.mxu0 0.0
    %694 = vmatpush1.msra.mxu0 0.0
    %695 = vmatprep.subr.mxu0 0.0
    %696 = vmatpush1.msra.mxu0 0.0
    %697 = vmatprep.subr.mxu0 0.0
    %698 = vmatpush1.msra.mxu0 0.0
    %699 = vmatprep.subr.mxu0 0.0
    %700 = vmatpush1.msra.mxu0 0.0
    %701 = vmatprep.subr.mxu0 0.0
    %702 = vmatpush1.msra.mxu0 0.0
    %703 = vmatprep.subr.mxu0 0.0
    %704 = vmatpush1.msra.mxu0 0.0
    %705 = vmatprep.subr.mxu0 0.0
    %706 = vmatpush1.msra.mxu0 0.0
    %707 = vmatprep.subr.mxu0 0.0
    %708 = vmatpush1.msra.mxu0 0.0
    %709 = vmatprep.subr.mxu0 0.0
    %710 = vmatpush1.msra.mxu0 0.0
    %711 = vmatprep.subr.mxu0 0.0
    %712 = vmatpush1.msra.mxu0 0.0
    %713 = vmatprep.subr.mxu0 0.0
    %714 = vmatpush1.msra.mxu0 0.0
    %715 = vmatprep.subr.mxu0 0.0
    %716 = vmatpush1.msra.mxu0 0.0
    %717 = vmatprep.subr.mxu0 0.0
    %718 = vmatpush1.msra.mxu0 0.0
    %719 = vmatprep.subr.mxu0 0.0
    %720 = vmatpush1.msra.mxu0 0.0
    %721 = vmatprep.subr.mxu0 0.0
    %722 = vmatpush1.msra.mxu0 0.0
    %723 = vmatprep.mubr.f32.mxu0 0.0
    %v724 = vand.u32 %v72, 4294901760
    %725 = vmatmul.mubr.f32.gmra.mrb[0].mxu0 %v724
    %v726 = vpop.f32.mrb[0].mxu0
    %v727 = vadd.f32 %v640, %v726
    %v728 = vpop.f32.mrb[0].mxu0
    %729 = vdwg.mxu0
    %v730 = vadd.f32 %v31, %v727
    %731 = vset.pattern.permute.xlu0 8
    %732 = vperm.xlu0 %731, %v30
    %v733 = vpop.permute.xlu0 %732
    %vm734 = vcmp.eq.s32.totalorder %v733, %v29
    %735 = vset.pattern.permute.xlu0 9
    %736 = vperm.xlu0 %735, %v30
    %v737 = vpop.permute.xlu0 %736
    %vm738 = vcmp.eq.s32.totalorder %v737, %v29
    %vm739 = vmor %vm734, %vm738
    %740 = vset.pattern.permute.xlu0 10
    %741 = vperm.xlu0 %740, %v30
    %v742 = vpop.permute.xlu0 %741
    %vm743 = vcmp.eq.s32.totalorder %v742, %v29
    %vm744 = vmor %vm739, %vm743
    %745 = vset.pattern.permute.xlu0 11
    %746 = vperm.xlu0 %745, %v30
    %v747 = vpop.permute.xlu0 %746
    %vm748 = vcmp.eq.s32.totalorder %v747, %v29
    %vm749 = vmor %vm744, %vm748
    %750 = vset.pattern.permute.xlu0 12
    %751 = vperm.xlu0 %750, %v30
    %v752 = vpop.permute.xlu0 %751
    %vm753 = vcmp.eq.s32.totalorder %v752, %v29
    %vm754 = vmor %vm749, %vm753
    %755 = vset.pattern.permute.xlu0 13
    %756 = vperm.xlu0 %755, %v30
    %v757 = vpop.permute.xlu0 %756
    %vm758 = vcmp.eq.s32.totalorder %v757, %v29
    %vm759 = vmor %vm754, %vm758
    %760 = vset.pattern.permute.xlu0 14
    %761 = vperm.xlu0 %760, %v30
    %v762 = vpop.permute.xlu0 %761
    %vm763 = vcmp.eq.s32.totalorder %v762, %v29
    %vm764 = vmor %vm759, %vm763
    %765 = vset.pattern.permute.xlu0 15
    %766 = vperm.xlu0 %765, %v30
    %v767 = vpop.permute.xlu0 %766
    %vm768 = vcmp.eq.s32.totalorder %v767, %v29
    %vm769 = vmor %vm764, %vm768
    %v770 = vsel %vm769, 1, 0
    %v771 = vcvt.s32.f32 %v770
    %v772 = vld [vmem:[#allocation2 + $0x80] sm:$0xff]
    %v773 = vld [vmem:[#allocation2 + $0x88] sm:$0xff]
    %v774 = vld [vmem:[#allocation2 + $0x90] sm:$0xff]
    %v775 = vld [vmem:[#allocation2 + $0x98] sm:$0xff]
    %v776 = vld [vmem:[#allocation2 + $0xa0] sm:$0xff]
    %v777 = vld [vmem:[#allocation2 + $0xa8] sm:$0xff]
    %v778 = vld [vmem:[#allocation2 + $0xb0] sm:$0xff]
    %v779 = vld [vmem:[#allocation2 + $0xb8] sm:$0xff]
    %v780 = vld [vmem:[#allocation2 + $0xc0] sm:$0xff]
    %v781 = vld [vmem:[#allocation2 + $0xc8] sm:$0xff]
    %v782 = vld [vmem:[#allocation2 + $0xd0] sm:$0xff]
    %v783 = vld [vmem:[#allocation2 + $0xd8] sm:$0xff]
    %v784 = vld [vmem:[#allocation2 + $0xe0] sm:$0xff]
    %v785 = vld [vmem:[#allocation2 + $0xe8] sm:$0xff]
    %v786 = vld [vmem:[#allocation2 + $0xf0] sm:$0xff]
    %v787 = vld [vmem:[#allocation2 + $0xf8] sm:$0xff]
    %788 = vmatprep.subr.mxu0 0.0
    %v789 = vand.u32 %v772, 4294901760
    %790 = vmatpush1.msra.mxu0 %v789
    %791 = vmatprep.subr.mxu0 0.0
    %v792 = vand.u32 %v773, 4294901760
    %793 = vmatpush1.msra.mxu0 %v792
    %794 = vmatprep.subr.mxu0 0.0
    %v795 = vand.u32 %v774, 4294901760
    %796 = vmatpush1.msra.mxu0 %v795
    %797 = vmatprep.subr.mxu0 0.0
    %v798 = vand.u32 %v775, 4294901760
    %799 = vmatpush1.msra.mxu0 %v798
    %800 = vmatprep.subr.mxu0 0.0
    %v801 = vand.u32 %v776, 4294901760
    %802 = vmatpush1.msra.mxu0 %v801
    %803 = vmatprep.subr.mxu0 0.0
    %v804 = vand.u32 %v777, 4294901760
    %805 = vmatpush1.msra.mxu0 %v804
    %806 = vmatprep.subr.mxu0 0.0
    %v807 = vand.u32 %v778, 4294901760
    %808 = vmatpush1.msra.mxu0 %v807
    %809 = vmatprep.subr.mxu0 0.0
    %v810 = vand.u32 %v779, 4294901760
    %811 = vmatpush1.msra.mxu0 %v810
    %812 = vmatprep.subr.mxu0 0.0
    %v813 = vand.u32 %v780, 4294901760
    %814 = vmatpush1.msra.mxu0 %v813
    %815 = vmatprep.subr.mxu0 0.0
    %v816 = vand.u32 %v781, 4294901760
    %817 = vmatpush1.msra.mxu0 %v816
    %818 = vmatprep.subr.mxu0 0.0
    %v819 = vand.u32 %v782, 4294901760
    %820 = vmatpush1.msra.mxu0 %v819
    %821 = vmatprep.subr.mxu0 0.0
    %v822 = vand.u32 %v783, 4294901760
    %823 = vmatpush1.msra.mxu0 %v822
    %824 = vmatprep.subr.mxu0 0.0
    %v825 = vand.u32 %v784, 4294901760
    %826 = vmatpush1.msra.mxu0 %v825
    %827 = vmatprep.subr.mxu0 0.0
    %v828 = vand.u32 %v785, 4294901760
    %829 = vmatpush1.msra.mxu0 %v828
    %830 = vmatprep.subr.mxu0 0.0
    %v831 = vand.u32 %v786, 4294901760
    %832 = vmatpush1.msra.mxu0 %v831
    %833 = vmatprep.subr.mxu0 0.0
    %v834 = vand.u32 %v787, 4294901760
    %835 = vmatpush1.msra.mxu0 %v834
    %836 = vmatprep.subr.mxu0 0.0
    %837 = vmatpush1.msra.mxu0 0.0
    %838 = vmatprep.subr.mxu0 0.0
    %839 = vmatpush1.msra.mxu0 0.0
    %840 = vmatprep.subr.mxu0 0.0
    %841 = vmatpush1.msra.mxu0 0.0
    %842 = vmatprep.subr.mxu0 0.0
    %843 = vmatpush1.msra.mxu0 0.0
    %844 = vmatprep.subr.mxu0 0.0
    %845 = vmatpush1.msra.mxu0 0.0
    %846 = vmatprep.subr.mxu0 0.0
    %847 = vmatpush1.msra.mxu0 0.0
    %848 = vmatprep.subr.mxu0 0.0
    %849 = vmatpush1.msra.mxu0 0.0
    %850 = vmatprep.subr.mxu0 0.0
    %851 = vmatpush1.msra.mxu0 0.0
    %852 = vmatprep.subr.mxu0 0.0
    %853 = vmatpush1.msra.mxu0 0.0
    %854 = vmatprep.subr.mxu0 0.0
    %855 = vmatpush1.msra.mxu0 0.0
    %856 = vmatprep.subr.mxu0 0.0
    %857 = vmatpush1.msra.mxu0 0.0
    %858 = vmatprep.subr.mxu0 0.0
    %859 = vmatpush1.msra.mxu0 0.0
    %860 = vmatprep.subr.mxu0 0.0
    %861 = vmatpush1.msra.mxu0 0.0
    %862 = vmatprep.subr.mxu0 0.0
    %863 = vmatpush1.msra.mxu0 0.0
    %864 = vmatprep.subr.mxu0 0.0
    %865 = vmatpush1.msra.mxu0 0.0
    %866 = vmatprep.subr.mxu0 0.0
    %867 = vmatpush1.msra.mxu0 0.0
    %868 = vmatprep.mubr.f32.mxu0 0.0
    %v869 = vand.u32 %v771, 4294901760
    %v870 = vsub.f32 %v771, %v869
    %v871 = vand.u32 %v870, 4294901760
    %v872 = vsub.f32 %v870, %v871
    %v873 = vand.u32 %v872, 4294901760
    %874 = vmatmul.mubr.f32.gmra.mrb[0].mxu0 %v873
    %v875 = vpop.f32.mrb[0].mxu0
    %v876 = vadd.f32 0.0, %v875
    %v877 = vpop.f32.mrb[0].mxu0
    %878 = vdwg.mxu0
    %879 = vmatprep.subr.mxu0 0.0
    %v880 = vand.u32 %v772, 4294901760
    %v881 = vsub.f32 %v772, %v880
    %v882 = vand.u32 %v881, 4294901760
    %v883 = vsub.f32 %v881, %v882
    %v884 = vand.u32 %v883, 4294901760
    %885 = vmatpush1.msra.mxu0 %v884
    %886 = vmatprep.subr.mxu0 0.0
    %v887 = vand.u32 %v773, 4294901760
    %v888 = vsub.f32 %v773, %v887
    %v889 = vand.u32 %v888, 4294901760
    %v890 = vsub.f32 %v888, %v889
    %v891 = vand.u32 %v890, 4294901760
    %892 = vmatpush1.msra.mxu0 %v891
    %893 = vmatprep.subr.mxu0 0.0
    %v894 = vand.u32 %v774, 4294901760
    %v895 = vsub.f32 %v774, %v894
    %v896 = vand.u32 %v895, 4294901760
    %v897 = vsub.f32 %v895, %v896
    %v898 = vand.u32 %v897, 4294901760
    %899 = vmatpush1.msra.mxu0 %v898
    %900 = vmatprep.subr.mxu0 0.0
    %v901 = vand.u32 %v775, 4294901760
    %v902 = vsub.f32 %v775, %v901
    %v903 = vand.u32 %v902, 4294901760
    %v904 = vsub.f32 %v902, %v903
    %v905 = vand.u32 %v904, 4294901760
    %906 = vmatpush1.msra.mxu0 %v905
    %907 = vmatprep.subr.mxu0 0.0
    %v908 = vand.u32 %v776, 4294901760
    %v909 = vsub.f32 %v776, %v908
    %v910 = vand.u32 %v909, 4294901760
    %v911 = vsub.f32 %v909, %v910
    %v912 = vand.u32 %v911, 4294901760
    %913 = vmatpush1.msra.mxu0 %v912
    %914 = vmatprep.subr.mxu0 0.0
    %v915 = vand.u32 %v777, 4294901760
    %v916 = vsub.f32 %v777, %v915
    %v917 = vand.u32 %v916, 4294901760
    %v918 = vsub.f32 %v916, %v917
    %v919 = vand.u32 %v918, 4294901760
    %920 = vmatpush1.msra.mxu0 %v919
    %921 = vmatprep.subr.mxu0 0.0
    %v922 = vand.u32 %v778, 4294901760
    %v923 = vsub.f32 %v778, %v922
    %v924 = vand.u32 %v923, 4294901760
    %v925 = vsub.f32 %v923, %v924
    %v926 = vand.u32 %v925, 4294901760
    %927 = vmatpush1.msra.mxu0 %v926
    %928 = vmatprep.subr.mxu0 0.0
    %v929 = vand.u32 %v779, 4294901760
    %v930 = vsub.f32 %v779, %v929
    %v931 = vand.u32 %v930, 4294901760
    %v932 = vsub.f32 %v930, %v931
    %v933 = vand.u32 %v932, 4294901760
    %934 = vmatpush1.msra.mxu0 %v933
    %935 = vmatprep.subr.mxu0 0.0
    %v936 = vand.u32 %v780, 4294901760
    %v937 = vsub.f32 %v780, %v936
    %v938 = vand.u32 %v937, 4294901760
    %v939 = vsub.f32 %v937, %v938
    %v940 = vand.u32 %v939, 4294901760
    %941 = vmatpush1.msra.mxu0 %v940
    %942 = vmatprep.subr.mxu0 0.0
    %v943 = vand.u32 %v781, 4294901760
    %v944 = vsub.f32 %v781, %v943
    %v945 = vand.u32 %v944, 4294901760
    %v946 = vsub.f32 %v944, %v945
    %v947 = vand.u32 %v946, 4294901760
    %948 = vmatpush1.msra.mxu0 %v947
    %949 = vmatprep.subr.mxu0 0.0
    %v950 = vand.u32 %v782, 4294901760
    %v951 = vsub.f32 %v782, %v950
    %v952 = vand.u32 %v951, 4294901760
    %v953 = vsub.f32 %v951, %v952
    %v954 = vand.u32 %v953, 4294901760
    %955 = vmatpush1.msra.mxu0 %v954
    %956 = vmatprep.subr.mxu0 0.0
    %v957 = vand.u32 %v783, 4294901760
    %v958 = vsub.f32 %v783, %v957
    %v959 = vand.u32 %v958, 4294901760
    %v960 = vsub.f32 %v958, %v959
    %v961 = vand.u32 %v960, 4294901760
    %962 = vmatpush1.msra.mxu0 %v961
    %963 = vmatprep.subr.mxu0 0.0
    %v964 = vand.u32 %v784, 4294901760
    %v965 = vsub.f32 %v784, %v964
    %v966 = vand.u32 %v965, 4294901760
    %v967 = vsub.f32 %v965, %v966
    %v968 = vand.u32 %v967, 4294901760
    %969 = vmatpush1.msra.mxu0 %v968
    %970 = vmatprep.subr.mxu0 0.0
    %v971 = vand.u32 %v785, 4294901760
    %v972 = vsub.f32 %v785, %v971
    %v973 = vand.u32 %v972, 4294901760
    %v974 = vsub.f32 %v972, %v973
    %v975 = vand.u32 %v974, 4294901760
    %976 = vmatpush1.msra.mxu0 %v975
    %977 = vmatprep.subr.mxu0 0.0
    %v978 = vand.u32 %v786, 4294901760
    %v979 = vsub.f32 %v786, %v978
    %v980 = vand.u32 %v979, 4294901760
    %v981 = vsub.f32 %v979, %v980
    %v982 = vand.u32 %v981, 4294901760
    %983 = vmatpush1.msra.mxu0 %v982
    %984 = vmatprep.subr.mxu0 0.0
    %v985 = vand.u32 %v787, 4294901760
    %v986 = vsub.f32 %v787, %v985
    %v987 = vand.u32 %v986, 4294901760
    %v988 = vsub.f32 %v986, %v987
    %v989 = vand.u32 %v988, 4294901760
    %990 = vmatpush1.msra.mxu0 %v989
    %991 = vmatprep.subr.mxu0 0.0
    %992 = vmatpush1.msra.mxu0 0.0
    %993 = vmatprep.subr.mxu0 0.0
    %994 = vmatpush1.msra.mxu0 0.0
    %995 = vmatprep.subr.mxu0 0.0
    %996 = vmatpush1.msra.mxu0 0.0
    %997 = vmatprep.subr.mxu0 0.0
    %998 = vmatpush1.msra.mxu0 0.0
    %999 = vmatprep.subr.mxu0 0.0
    %1000 = vmatpush1.msra.mxu0 0.0
    %1001 = vmatprep.subr.mxu0 0.0
    %1002 = vmatpush1.msra.mxu0 0.0
    %1003 = vmatprep.subr.mxu0 0.0
    %1004 = vmatpush1.msra.mxu0 0.0
    %1005 = vmatprep.subr.mxu0 0.0
    %1006 = vmatpush1.msra.mxu0 0.0
    %1007 = vmatprep.subr.mxu0 0.0
    %1008 = vmatpush1.msra.mxu0 0.0
    %1009 = vmatprep.subr.mxu0 0.0
    %1010 = vmatpush1.msra.mxu0 0.0
    %1011 = vmatprep.subr.mxu0 0.0
    %1012 = vmatpush1.msra.mxu0 0.0
    %1013 = vmatprep.subr.mxu0 0.0
    %1014 = vmatpush1.msra.mxu0 0.0
    %1015 = vmatprep.subr.mxu0 0.0
    %1016 = vmatpush1.msra.mxu0 0.0
    %1017 = vmatprep.subr.mxu0 0.0
    %1018 = vmatpush1.msra.mxu0 0.0
    %1019 = vmatprep.subr.mxu0 0.0
    %1020 = vmatpush1.msra.mxu0 0.0
    %1021 = vmatprep.subr.mxu0 0.0
    %1022 = vmatpush1.msra.mxu0 0.0
    %1023 = vmatprep.mubr.f32.mxu0 0.0
    %v1024 = vand.u32 %v771, 4294901760
    %1025 = vmatmul.mubr.f32.gmra.mrb[0].mxu0 %v1024
    %v1026 = vpop.f32.mrb[0].mxu0
    %v1027 = vadd.f32 %v876, %v1026
    %v1028 = vpop.f32.mrb[0].mxu0
    %1029 = vdwg.mxu0
    %1030 = vmatprep.subr.mxu0 0.0
    %v1031 = vand.u32 %v772, 4294901760
    %v1032 = vsub.f32 %v772, %v1031
    %1033 = vmatpush1.msra.mxu0 %v1032
    %1034 = vmatprep.subr.mxu0 0.0
    %v1035 = vand.u32 %v773, 4294901760
    %v1036 = vsub.f32 %v773, %v1035
    %1037 = vmatpush1.msra.mxu0 %v1036
    %1038 = vmatprep.subr.mxu0 0.0
    %v1039 = vand.u32 %v774, 4294901760
    %v1040 = vsub.f32 %v774, %v1039
    %1041 = vmatpush1.msra.mxu0 %v1040
    %1042 = vmatprep.subr.mxu0 0.0
    %v1043 = vand.u32 %v775, 4294901760
    %v1044 = vsub.f32 %v775, %v1043
    %1045 = vmatpush1.msra.mxu0 %v1044
    %1046 = vmatprep.subr.mxu0 0.0
    %v1047 = vand.u32 %v776, 4294901760
    %v1048 = vsub.f32 %v776, %v1047
    %1049 = vmatpush1.msra.mxu0 %v1048
    %1050 = vmatprep.subr.mxu0 0.0
    %v1051 = vand.u32 %v777, 4294901760
    %v1052 = vsub.f32 %v777, %v1051
    %1053 = vmatpush1.msra.mxu0 %v1052
    %1054 = vmatprep.subr.mxu0 0.0
    %v1055 = vand.u32 %v778, 4294901760
    %v1056 = vsub.f32 %v778, %v1055
    %1057 = vmatpush1.msra.mxu0 %v1056
    %1058 = vmatprep.subr.mxu0 0.0
    %v1059 = vand.u32 %v779, 4294901760
    %v1060 = vsub.f32 %v779, %v1059
    %1061 = vmatpush1.msra.mxu0 %v1060
    %1062 = vmatprep.subr.mxu0 0.0
    %v1063 = vand.u32 %v780, 4294901760
    %v1064 = vsub.f32 %v780, %v1063
    %1065 = vmatpush1.msra.mxu0 %v1064
    %1066 = vmatprep.subr.mxu0 0.0
    %v1067 = vand.u32 %v781, 4294901760
    %v1068 = vsub.f32 %v781, %v1067
    %1069 = vmatpush1.msra.mxu0 %v1068
    %1070 = vmatprep.subr.mxu0 0.0
    %v1071 = vand.u32 %v782, 4294901760
    %v1072 = vsub.f32 %v782, %v1071
    %1073 = vmatpush1.msra.mxu0 %v1072
    %1074 = vmatprep.subr.mxu0 0.0
    %v1075 = vand.u32 %v783, 4294901760
    %v1076 = vsub.f32 %v783, %v1075
    %1077 = vmatpush1.msra.mxu0 %v1076
    %1078 = vmatprep.subr.mxu0 0.0
    %v1079 = vand.u32 %v784, 4294901760
    %v1080 = vsub.f32 %v784, %v1079
    %1081 = vmatpush1.msra.mxu0 %v1080
    %1082 = vmatprep.subr.mxu0 0.0
    %v1083 = vand.u32 %v785, 4294901760
    %v1084 = vsub.f32 %v785, %v1083
    %1085 = vmatpush1.msra.mxu0 %v1084
    %1086 = vmatprep.subr.mxu0 0.0
    %v1087 = vand.u32 %v786, 4294901760
    %v1088 = vsub.f32 %v786, %v1087
    %1089 = vmatpush1.msra.mxu0 %v1088
    %1090 = vmatprep.subr.mxu0 0.0
    %v1091 = vand.u32 %v787, 4294901760
    %v1092 = vsub.f32 %v787, %v1091
    %1093 = vmatpush1.msra.mxu0 %v1092
    %1094 = vmatprep.subr.mxu0 0.0
    %1095 = vmatpush1.msra.mxu0 0.0
    %1096 = vmatprep.subr.mxu0 0.0
    %1097 = vmatpush1.msra.mxu0 0.0
    %1098 = vmatprep.subr.mxu0 0.0
    %1099 = vmatpush1.msra.mxu0 0.0
    %1100 = vmatprep.subr.mxu0 0.0
    %1101 = vmatpush1.msra.mxu0 0.0
    %1102 = vmatprep.subr.mxu0 0.0
    %1103 = vmatpush1.msra.mxu0 0.0
    %1104 = vmatprep.subr.mxu0 0.0
    %1105 = vmatpush1.msra.mxu0 0.0
    %1106 = vmatprep.subr.mxu0 0.0
    %1107 = vmatpush1.msra.mxu0 0.0
    %1108 = vmatprep.subr.mxu0 0.0
    %1109 = vmatpush1.msra.mxu0 0.0
    %1110 = vmatprep.subr.mxu0 0.0
    %1111 = vmatpush1.msra.mxu0 0.0
    %1112 = vmatprep.subr.mxu0 0.0
    %1113 = vmatpush1.msra.mxu0 0.0
    %1114 = vmatprep.subr.mxu0 0.0
    %1115 = vmatpush1.msra.mxu0 0.0
    %1116 = vmatprep.subr.mxu0 0.0
    %1117 = vmatpush1.msra.mxu0 0.0
    %1118 = vmatprep.subr.mxu0 0.0
    %1119 = vmatpush1.msra.mxu0 0.0
    %1120 = vmatprep.subr.mxu0 0.0
    %1121 = vmatpush1.msra.mxu0 0.0
    %1122 = vmatprep.subr.mxu0 0.0
    %1123 = vmatpush1.msra.mxu0 0.0
    %1124 = vmatprep.subr.mxu0 0.0
    %1125 = vmatpush1.msra.mxu0 0.0
    %1126 = vmatprep.mubr.f32.mxu0 0.0
    %v1127 = vand.u32 %v771, 4294901760
    %v1128 = vsub.f32 %v771, %v1127
    %1129 = vmatmul.mubr.f32.gmra.mrb[0].mxu0 %v1128
    %v1130 = vpop.f32.mrb[0].mxu0
    %v1131 = vadd.f32 %v1027, %v1130
    %v1132 = vpop.f32.mrb[0].mxu0
    %1133 = vdwg.mxu0
    %1134 = vmatprep.subr.mxu0 0.0
    %v1135 = vand.u32 %v772, 4294901760
    %1136 = vmatpush1.msra.mxu0 %v1135
    %1137 = vmatprep.subr.mxu0 0.0
    %v1138 = vand.u32 %v773, 4294901760
    %1139 = vmatpush1.msra.mxu0 %v1138
    %1140 = vmatprep.subr.mxu0 0.0
    %v1141 = vand.u32 %v774, 4294901760
    %1142 = vmatpush1.msra.mxu0 %v1141
    %1143 = vmatprep.subr.mxu0 0.0
    %v1144 = vand.u32 %v775, 4294901760
    %1145 = vmatpush1.msra.mxu0 %v1144
    %1146 = vmatprep.subr.mxu0 0.0
    %v1147 = vand.u32 %v776, 4294901760
    %1148 = vmatpush1.msra.mxu0 %v1147
    %1149 = vmatprep.subr.mxu0 0.0
    %v1150 = vand.u32 %v777, 4294901760
    %1151 = vmatpush1.msra.mxu0 %v1150
    %1152 = vmatprep.subr.mxu0 0.0
    %v1153 = vand.u32 %v778, 4294901760
    %1154 = vmatpush1.msra.mxu0 %v1153
    %1155 = vmatprep.subr.mxu0 0.0
    %v1156 = vand.u32 %v779, 4294901760
    %1157 = vmatpush1.msra.mxu0 %v1156
    %1158 = vmatprep.subr.mxu0 0.0
    %v1159 = vand.u32 %v780, 4294901760
    %1160 = vmatpush1.msra.mxu0 %v1159
    %1161 = vmatprep.subr.mxu0 0.0
    %v1162 = vand.u32 %v781, 4294901760
    %1163 = vmatpush1.msra.mxu0 %v1162
    %1164 = vmatprep.subr.mxu0 0.0
    %v1165 = vand.u32 %v782, 4294901760
    %1166 = vmatpush1.msra.mxu0 %v1165
    %1167 = vmatprep.subr.mxu0 0.0
    %v1168 = vand.u32 %v783, 4294901760
    %1169 = vmatpush1.msra.mxu0 %v1168
    %1170 = vmatprep.subr.mxu0 0.0
    %v1171 = vand.u32 %v784, 4294901760
    %1172 = vmatpush1.msra.mxu0 %v1171
    %1173 = vmatprep.subr.mxu0 0.0
    %v1174 = vand.u32 %v785, 4294901760
    %1175 = vmatpush1.msra.mxu0 %v1174
    %1176 = vmatprep.subr.mxu0 0.0
    %v1177 = vand.u32 %v786, 4294901760
    %1178 = vmatpush1.msra.mxu0 %v1177
    %1179 = vmatprep.subr.mxu0 0.0
    %v1180 = vand.u32 %v787, 4294901760
    %1181 = vmatpush1.msra.mxu0 %v1180
    %1182 = vmatprep.subr.mxu0 0.0
    %1183 = vmatpush1.msra.mxu0 0.0
    %1184 = vmatprep.subr.mxu0 0.0
    %1185 = vmatpush1.msra.mxu0 0.0
    %1186 = vmatprep.subr.mxu0 0.0
    %1187 = vmatpush1.msra.mxu0 0.0
    %1188 = vmatprep.subr.mxu0 0.0
    %1189 = vmatpush1.msra.mxu0 0.0
    %1190 = vmatprep.subr.mxu0 0.0
    %1191 = vmatpush1.msra.mxu0 0.0
    %1192 = vmatprep.subr.mxu0 0.0
    %1193 = vmatpush1.msra.mxu0 0.0
    %1194 = vmatprep.subr.mxu0 0.0
    %1195 = vmatpush1.msra.mxu0 0.0
    %1196 = vmatprep.subr.mxu0 0.0
    %1197 = vmatpush1.msra.mxu0 0.0
    %1198 = vmatprep.subr.mxu0 0.0
    %1199 = vmatpush1.msra.mxu0 0.0
    %1200 = vmatprep.subr.mxu0 0.0
    %1201 = vmatpush1.msra.mxu0 0.0
    %1202 = vmatprep.subr.mxu0 0.0
    %1203 = vmatpush1.msra.mxu0 0.0
    %1204 = vmatprep.subr.mxu0 0.0
    %1205 = vmatpush1.msra.mxu0 0.0
    %1206 = vmatprep.subr.mxu0 0.0
    %1207 = vmatpush1.msra.mxu0 0.0
    %1208 = vmatprep.subr.mxu0 0.0
    %1209 = vmatpush1.msra.mxu0 0.0
    %1210 = vmatprep.subr.mxu0 0.0
    %1211 = vmatpush1.msra.mxu0 0.0
    %1212 = vmatprep.subr.mxu0 0.0
    %1213 = vmatpush1.msra.mxu0 0.0
    %1214 = vmatprep.mubr.f32.mxu0 0.0
    %v1215 = vand.u32 %v771, 4294901760
    %v1216 = vsub.f32 %v771, %v1215
    %v1217 = vand.u32 %v1216, 4294901760
    %1218 = vmatmul.mubr.f32.gmra.mrb[0].mxu0 %v1217
    %v1219 = vpop.f32.mrb[0].mxu0
    %v1220 = vadd.f32 %v1131, %v1219
    %v1221 = vpop.f32.mrb[0].mxu0
    %1222 = vdwg.mxu0
    %1223 = vmatprep.subr.mxu0 0.0
    %v1224 = vand.u32 %v772, 4294901760
    %v1225 = vsub.f32 %v772, %v1224
    %v1226 = vand.u32 %v1225, 4294901760
    %1227 = vmatpush1.msra.mxu0 %v1226
    %1228 = vmatprep.subr.mxu0 0.0
    %v1229 = vand.u32 %v773, 4294901760
    %v1230 = vsub.f32 %v773, %v1229
    %v1231 = vand.u32 %v1230, 4294901760
    %1232 = vmatpush1.msra.mxu0 %v1231
    %1233 = vmatprep.subr.mxu0 0.0
    %v1234 = vand.u32 %v774, 4294901760
    %v1235 = vsub.f32 %v774, %v1234
    %v1236 = vand.u32 %v1235, 4294901760
    %1237 = vmatpush1.msra.mxu0 %v1236
    %1238 = vmatprep.subr.mxu0 0.0
    %v1239 = vand.u32 %v775, 4294901760
    %v1240 = vsub.f32 %v775, %v1239
    %v1241 = vand.u32 %v1240, 4294901760
    %1242 = vmatpush1.msra.mxu0 %v1241
    %1243 = vmatprep.subr.mxu0 0.0
    %v1244 = vand.u32 %v776, 4294901760
    %v1245 = vsub.f32 %v776, %v1244
    %v1246 = vand.u32 %v1245, 4294901760
    %1247 = vmatpush1.msra.mxu0 %v1246
    %1248 = vmatprep.subr.mxu0 0.0
    %v1249 = vand.u32 %v777, 4294901760
    %v1250 = vsub.f32 %v777, %v1249
    %v1251 = vand.u32 %v1250, 4294901760
    %1252 = vmatpush1.msra.mxu0 %v1251
    %1253 = vmatprep.subr.mxu0 0.0
    %v1254 = vand.u32 %v778, 4294901760
    %v1255 = vsub.f32 %v778, %v1254
    %v1256 = vand.u32 %v1255, 4294901760
    %1257 = vmatpush1.msra.mxu0 %v1256
    %1258 = vmatprep.subr.mxu0 0.0
    %v1259 = vand.u32 %v779, 4294901760
    %v1260 = vsub.f32 %v779, %v1259
    %v1261 = vand.u32 %v1260, 4294901760
    %1262 = vmatpush1.msra.mxu0 %v1261
    %1263 = vmatprep.subr.mxu0 0.0
    %v1264 = vand.u32 %v780, 4294901760
    %v1265 = vsub.f32 %v780, %v1264
    %v1266 = vand.u32 %v1265, 4294901760
    %1267 = vmatpush1.msra.mxu0 %v1266
    %1268 = vmatprep.subr.mxu0 0.0
    %v1269 = vand.u32 %v781, 4294901760
    %v1270 = vsub.f32 %v781, %v1269
    %v1271 = vand.u32 %v1270, 4294901760
    %1272 = vmatpush1.msra.mxu0 %v1271
    %1273 = vmatprep.subr.mxu0 0.0
    %v1274 = vand.u32 %v782, 4294901760
    %v1275 = vsub.f32 %v782, %v1274
    %v1276 = vand.u32 %v1275, 4294901760
    %1277 = vmatpush1.msra.mxu0 %v1276
    %1278 = vmatprep.subr.mxu0 0.0
    %v1279 = vand.u32 %v783, 4294901760
    %v1280 = vsub.f32 %v783, %v1279
    %v1281 = vand.u32 %v1280, 4294901760
    %1282 = vmatpush1.msra.mxu0 %v1281
    %1283 = vmatprep.subr.mxu0 0.0
    %v1284 = vand.u32 %v784, 4294901760
    %v1285 = vsub.f32 %v784, %v1284
    %v1286 = vand.u32 %v1285, 4294901760
    %1287 = vmatpush1.msra.mxu0 %v1286
    %1288 = vmatprep.subr.mxu0 0.0
    %v1289 = vand.u32 %v785, 4294901760
    %v1290 = vsub.f32 %v785, %v1289
    %v1291 = vand.u32 %v1290, 4294901760
    %1292 = vmatpush1.msra.mxu0 %v1291
    %1293 = vmatprep.subr.mxu0 0.0
    %v1294 = vand.u32 %v786, 4294901760
    %v1295 = vsub.f32 %v786, %v1294
    %v1296 = vand.u32 %v1295, 4294901760
    %1297 = vmatpush1.msra.mxu0 %v1296
    %1298 = vmatprep.subr.mxu0 0.0
    %v1299 = vand.u32 %v787, 4294901760
    %v1300 = vsub.f32 %v787, %v1299
    %v1301 = vand.u32 %v1300, 4294901760
    %1302 = vmatpush1.msra.mxu0 %v1301
    %1303 = vmatprep.subr.mxu0 0.0
    %1304 = vmatpush1.msra.mxu0 0.0
    %1305 = vmatprep.subr.mxu0 0.0
    %1306 = vmatpush1.msra.mxu0 0.0
    %1307 = vmatprep.subr.mxu0 0.0
    %1308 = vmatpush1.msra.mxu0 0.0
    %1309 = vmatprep.subr.mxu0 0.0
    %1310 = vmatpush1.msra.mxu0 0.0
    %1311 = vmatprep.subr.mxu0 0.0
    %1312 = vmatpush1.msra.mxu0 0.0
    %1313 = vmatprep.subr.mxu0 0.0
    %1314 = vmatpush1.msra.mxu0 0.0
    %1315 = vmatprep.subr.mxu0 0.0
    %1316 = vmatpush1.msra.mxu0 0.0
    %1317 = vmatprep.subr.mxu0 0.0
    %1318 = vmatpush1.msra.mxu0 0.0
    %1319 = vmatprep.subr.mxu0 0.0
    %1320 = vmatpush1.msra.mxu0 0.0
    %1321 = vmatprep.subr.mxu0 0.0
    %1322 = vmatpush1.msra.mxu0 0.0
    %1323 = vmatprep.subr.mxu0 0.0
    %1324 = vmatpush1.msra.mxu0 0.0
    %1325 = vmatprep.subr.mxu0 0.0
    %1326 = vmatpush1.msra.mxu0 0.0
    %1327 = vmatprep.subr.mxu0 0.0
    %1328 = vmatpush1.msra.mxu0 0.0
    %1329 = vmatprep.subr.mxu0 0.0
    %1330 = vmatpush1.msra.mxu0 0.0
    %1331 = vmatprep.subr.mxu0 0.0
    %1332 = vmatpush1.msra.mxu0 0.0
    %1333 = vmatprep.subr.mxu0 0.0
    %1334 = vmatpush1.msra.mxu0 0.0
    %1335 = vmatprep.mubr.f32.mxu0 0.0
    %v1336 = vand.u32 %v771, 4294901760
    %1337 = vmatmul.mubr.f32.gmra.mrb[0].mxu0 %v1336
    %v1338 = vpop.f32.mrb[0].mxu0
    %v1339 = vadd.f32 %v1220, %v1338
    %v1340 = vpop.f32.mrb[0].mxu0
    %1341 = vdwg.mxu0
    %1342 = vmatprep.subr.mxu0 0.0
    %v1343 = vand.u32 %v772, 4294901760
    %1344 = vmatpush1.msra.mxu0 %v1343
    %1345 = vmatprep.subr.mxu0 0.0
    %v1346 = vand.u32 %v773, 4294901760
    %1347 = vmatpush1.msra.mxu0 %v1346
    %1348 = vmatprep.subr.mxu0 0.0
    %v1349 = vand.u32 %v774, 4294901760
    %1350 = vmatpush1.msra.mxu0 %v1349
    %1351 = vmatprep.subr.mxu0 0.0
    %v1352 = vand.u32 %v775, 4294901760
    %1353 = vmatpush1.msra.mxu0 %v1352
    %1354 = vmatprep.subr.mxu0 0.0
    %v1355 = vand.u32 %v776, 4294901760
    %1356 = vmatpush1.msra.mxu0 %v1355
    %1357 = vmatprep.subr.mxu0 0.0
    %v1358 = vand.u32 %v777, 4294901760
    %1359 = vmatpush1.msra.mxu0 %v1358
    %1360 = vmatprep.subr.mxu0 0.0
    %v1361 = vand.u32 %v778, 4294901760
    %1362 = vmatpush1.msra.mxu0 %v1361
    %1363 = vmatprep.subr.mxu0 0.0
    %v1364 = vand.u32 %v779, 4294901760
    %1365 = vmatpush1.msra.mxu0 %v1364
    %1366 = vmatprep.subr.mxu0 0.0
    %v1367 = vand.u32 %v780, 4294901760
    %1368 = vmatpush1.msra.mxu0 %v1367
    %1369 = vmatprep.subr.mxu0 0.0
    %v1370 = vand.u32 %v781, 4294901760
    %1371 = vmatpush1.msra.mxu0 %v1370
    %1372 = vmatprep.subr.mxu0 0.0
    %v1373 = vand.u32 %v782, 4294901760
    %1374 = vmatpush1.msra.mxu0 %v1373
    %1375 = vmatprep.subr.mxu0 0.0
    %v1376 = vand.u32 %v783, 4294901760
    %1377 = vmatpush1.msra.mxu0 %v1376
    %1378 = vmatprep.subr.mxu0 0.0
    %v1379 = vand.u32 %v784, 4294901760
    %1380 = vmatpush1.msra.mxu0 %v1379
    %1381 = vmatprep.subr.mxu0 0.0
    %v1382 = vand.u32 %v785, 4294901760
    %1383 = vmatpush1.msra.mxu0 %v1382
    %1384 = vmatprep.subr.mxu0 0.0
    %v1385 = vand.u32 %v786, 4294901760
    %1386 = vmatpush1.msra.mxu0 %v1385
    %1387 = vmatprep.subr.mxu0 0.0
    %v1388 = vand.u32 %v787, 4294901760
    %1389 = vmatpush1.msra.mxu0 %v1388
    %1390 = vmatprep.subr.mxu0 0.0
    %1391 = vmatpush1.msra.mxu0 0.0
    %1392 = vmatprep.subr.mxu0 0.0
    %1393 = vmatpush1.msra.mxu0 0.0
    %1394 = vmatprep.subr.mxu0 0.0
    %1395 = vmatpush1.msra.mxu0 0.0
    %1396 = vmatprep.subr.mxu0 0.0
    %1397 = vmatpush1.msra.mxu0 0.0
    %1398 = vmatprep.subr.mxu0 0.0
    %1399 = vmatpush1.msra.mxu0 0.0
    %1400 = vmatprep.subr.mxu0 0.0
    %1401 = vmatpush1.msra.mxu0 0.0
    %1402 = vmatprep.subr.mxu0 0.0
    %1403 = vmatpush1.msra.mxu0 0.0
    %1404 = vmatprep.subr.mxu0 0.0
    %1405 = vmatpush1.msra.mxu0 0.0
    %1406 = vmatprep.subr.mxu0 0.0
    %1407 = vmatpush1.msra.mxu0 0.0
    %1408 = vmatprep.subr.mxu0 0.0
    %1409 = vmatpush1.msra.mxu0 0.0
    %1410 = vmatprep.subr.mxu0 0.0
    %1411 = vmatpush1.msra.mxu0 0.0
    %1412 = vmatprep.subr.mxu0 0.0
    %1413 = vmatpush1.msra.mxu0 0.0
    %1414 = vmatprep.subr.mxu0 0.0
    %1415 = vmatpush1.msra.mxu0 0.0
    %1416 = vmatprep.subr.mxu0 0.0
    %1417 = vmatpush1.msra.mxu0 0.0
    %1418 = vmatprep.subr.mxu0 0.0
    %1419 = vmatpush1.msra.mxu0 0.0
    %1420 = vmatprep.subr.mxu0 0.0
    %1421 = vmatpush1.msra.mxu0 0.0
    %1422 = vmatprep.mubr.f32.mxu0 0.0
    %v1423 = vand.u32 %v771, 4294901760
    %1424 = vmatmul.mubr.f32.gmra.mrb[0].mxu0 %v1423
    %v1425 = vpop.f32.mrb[0].mxu0
    %v1426 = vadd.f32 %v1339, %v1425
    %v1427 = vpop.f32.mrb[0].mxu0
    %1428 = vdwg.mxu0
    %v1429 = vadd.f32 %v730, %v1426
    %1430 = vst [vmem:[%s3] sm:$0xf] %v1429
    // Predicated region
    $region18: #{forward.1} parent=1 // pred_check
      _
    $region19: #{forward.1} parent=1 // pred_check_branch
      %1432 = sbr.rel (0) target = $region21
    $region20: #{forward.1} parent=1 // pred_region
      _
    $region21: #{forward.1} parent=1 // pred_fallthru
      _
    // Predicated region
    $region22: #{forward.1} parent=1 // pred_check
      _
    $region23: #{forward.1} parent=1 // pred_check_branch
      %1434 = sbr.rel (0) target = $region25
    $region24: #{forward.1} parent=1 // pred_region
      _
    $region25: #{forward.1} parent=1 // pred_fallthru
      _
    %1435 = vsyncpa [#allocation3], 1

</llo_original>
